<compile_context>
chip_gen: v6e
topology: v6e:2x2x1
jax: 0.10.0
libtpu: 0.0.40
codegen_flags: <defaults>
</compile_context>

<pallas_src>
import jax
import jax.numpy as jnp
from jax.experimental import pallas as pl
from jax.experimental.pallas import tpu as pltpu

HIDDEN_SIZE = 32        # BERT hidden size (stand-in, small)
HIDDEN_SIZE_LSTM = 16   # hidden_size_lstm
ATTN_DIM = 128          # linear1 / f1 intermediate width (fixed in module)
N_CLASS = 4             # n_class
OUT_PAD = 128           # lane-dense padded output width


def _bert_lstm_attention_kernel(
    x_ref,        # (TB, S, D)         bf16
    init_ref,     # (TB, 4, H)         f32   [h0_f, c0_f, h0_b, c0_b]
    wih_ref,      # (D, 8H)            bf16  [fwd | bwd] columns, gates (i,f,o,g)
    bih_ref,      # (1, 8H)            f32   fused b_ih + b_hh, both directions
    whh_ref,      # (2, H, 4H)         bf16  [fwd, bwd], gates (i,f,o,g)
    wf1_ref,      # (2H, 128)          bf16
    bf1_ref,      # (1, 128)           f32
    wf2_ref,      # (128, OUT_PAD)     bf16  columns >= N_CLASS are zero
    bf2_ref,      # (1, OUT_PAD)       f32   columns >= N_CLASS are -1e30
    out_ref,      # (TB, 1, OUT_PAD)   f32
):
    TB, S, D = x_ref.shape
    H = whh_ref.shape[1]

    # Hoisted input projection for BOTH directions in one matmul, bias folded in.
    x_flat = x_ref[...].reshape(TB * S, D)                         # bf16
    xw = (jnp.dot(x_flat, wih_ref[...], preferred_element_type=jnp.float32)
          + bih_ref[...]).reshape(TB, S, 8 * H)                    # f32

    whh_f = whh_ref[0]                                             # (H, 4H) bf16
    whh_b = whh_ref[1]

    def run_direction(h, c, col_off, whh, reverse):
        # PyTorch LSTM cell with gates reordered to (i, f, o, g); the unrolled
        # static loop keeps every slice index static.  Only the tiny recurrent
        # h @ W_hh dot remains on the serial critical path; pooled accumulates
        # the (degenerate-attention) sum over the sequence in-place.
        pooled = jnp.zeros((TB, H), jnp.float32)
        order = range(S - 1, -1, -1) if reverse else range(S)
        for t in order:
            g = xw[:, t, col_off:col_off + 4 * H] + jnp.dot(
                h.astype(jnp.bfloat16), whh, preferred_element_type=jnp.float32)
            sg = jax.nn.sigmoid(g[:, :3 * H])        # i, f, o in one activation
            i_g = sg[:, 0 * H:1 * H]
            f_g = sg[:, 1 * H:2 * H]
            o_g = sg[:, 2 * H:3 * H]
            g_g = jnp.tanh(g[:, 3 * H:4 * H])
            c = f_g * c + i_g * g_g
            h = o_g * jnp.tanh(c)
            pooled = pooled + h
        return pooled

    pooled_f = run_direction(init_ref[:, 0, :], init_ref[:, 1, :],
                             0, whh_f, reverse=False)
    pooled_b = run_direction(init_ref[:, 2, :], init_ref[:, 3, :],
                             4 * H, whh_b, reverse=True)
    pooled = jnp.concatenate([pooled_f, pooled_b], axis=-1)        # (TB, 2H) f32

    # f1 head: Linear -> (Dropout identity) -> ReLU -> Linear -> Softmax.
    z = jnp.maximum(
        jnp.dot(pooled.astype(jnp.bfloat16), wf1_ref[...],
                preferred_element_type=jnp.float32) + bf1_ref[...], 0.0)
    logits = (jnp.dot(z.astype(jnp.bfloat16), wf2_ref[...],
                      preferred_element_type=jnp.float32) + bf2_ref[...])
    # Padded lanes carry -1e30 -> exp() underflows to 0, so the softmax over the
    # 128-lane slab equals the softmax over the real N_CLASS logits.
    out_ref[...] = jax.nn.softmax(logits, axis=-1).reshape(TB, 1, OUT_PAD)


def bert_lstm_attention_forward(x, params, h0, c0, *, batch_tile=1):
    """x: (B, S, HIDDEN_SIZE) f32, h0/c0: (2, B, HIDDEN_SIZE_LSTM) f32."""
    B, S, D = x.shape
    H = HIDDEN_SIZE_LSTM
    assert B % batch_tile == 0, "batch_tile must divide the batch size"
    tb = batch_tile

    def reorder(w):
        # PyTorch gate order (i, f, g, o) -> kernel order (i, f, o, g) along 4H.
        return jnp.concatenate([w[:H], w[H:2 * H], w[3 * H:4 * H], w[2 * H:3 * H]],
                               axis=0)

    # Fused input-projection weights / biases for both directions.
    wih_cat = jnp.concatenate(
        [reorder(params["w_ih_f"]).T, reorder(params["w_ih_b"]).T],
        axis=1).astype(jnp.bfloat16)                               # (D, 8H)
    b_cat = jnp.concatenate(
        [reorder(params["b_ih_f"] + params["b_hh_f"]),
         reorder(params["b_ih_b"] + params["b_hh_b"])]
    ).reshape(1, 8 * H).astype(jnp.float32)                        # (1, 8H)
    whh = jnp.stack([reorder(params["w_hh_f"]).T,
                     reorder(params["w_hh_b"]).T],
                    axis=0).astype(jnp.bfloat16)                   # (2, H, 4H)

    wf1 = params["wf1"].T.astype(jnp.bfloat16)                     # (2H, 128)
    bf1 = params["bf1"].reshape(1, -1).astype(jnp.float32)
    wf2 = jnp.zeros((ATTN_DIM, OUT_PAD), jnp.float32
                    ).at[:, :N_CLASS].set(params["wf2"].T).astype(jnp.bfloat16)
    bf2 = jnp.full((1, OUT_PAD), -1e30, jnp.float32
                   ).at[0, :N_CLASS].set(params["bf2"])

    init = jnp.stack([h0[0], c0[0], h0[1], c0[1]], axis=1).astype(jnp.float32)
    x_bf16 = x.astype(jnp.bfloat16)

    out_padded = pl.pallas_call(
        _bert_lstm_attention_kernel,
        out_shape=jax.ShapeDtypeStruct((B, 1, OUT_PAD), jnp.float32),
        grid=(B // tb,),
        in_specs=[
            pl.BlockSpec((tb, S, D), lambda b: (b, 0, 0)),          # x
            pl.BlockSpec((tb, 4, H), lambda b: (b, 0, 0)),          # init state
            pl.BlockSpec((D, 8 * H), lambda b: (0, 0)),             # W_ih (both dirs)
            pl.BlockSpec((1, 8 * H), lambda b: (0, 0)),             # fused bias
            pl.BlockSpec((2, H, 4 * H), lambda b: (0, 0, 0)),       # W_hh (both dirs)
            pl.BlockSpec((2 * H, ATTN_DIM), lambda b: (0, 0)),      # f1 W1
            pl.BlockSpec((1, ATTN_DIM), lambda b: (0, 0)),          # f1 b1
            pl.BlockSpec((ATTN_DIM, OUT_PAD), lambda b: (0, 0)),    # f1 W2 (padded)
            pl.BlockSpec((1, OUT_PAD), lambda b: (0, 0)),           # f1 b2 (padded)
        ],
        out_specs=pl.BlockSpec((tb, 1, OUT_PAD), lambda b: (b, 0, 0)),
        compiler_params=pltpu.CompilerParams(
            dimension_semantics=("parallel",)),
    )(x_bf16, init, wih_cat, b_cat, whh, wf1, bf1, wf2, bf2)

    return out_padded.reshape(B, OUT_PAD)[:, :N_CLASS]


def init_params(key):
    """Deterministic parameter init matching the module's shapes."""
    H, D = HIDDEN_SIZE_LSTM, HIDDEN_SIZE
    ks = jax.random.split(key, 16)

    def u(k, shape, fan_in):
        bound = 1.0 / float(fan_in) ** 0.5
        return jax.random.uniform(k, shape, jnp.float32, -bound, bound)

    return dict(
        # nn.LSTM(HIDDEN_SIZE, HIDDEN_SIZE_LSTM, bidirectional=True)
        w_ih_f=u(ks[0], (4 * H, D), H), w_hh_f=u(ks[1], (4 * H, H), H),
        b_ih_f=u(ks[2], (4 * H,), H),   b_hh_f=u(ks[3], (4 * H,), H),
        w_ih_b=u(ks[4], (4 * H, D), H), w_hh_b=u(ks[5], (4 * H, H), H),
        b_ih_b=u(ks[6], (4 * H,), H),   b_hh_b=u(ks[7], (4 * H,), H),
        # linear1: Linear(2H, 128); u_w: Linear(128, 1).  These parameters have
        # no effect on the forward output (softmax over a size-1 axis == 1);
        # kept only for module-shape fidelity / the pure-JAX reference.
        w1=u(ks[8], (ATTN_DIM, 2 * H), 2 * H), b1=u(ks[9], (ATTN_DIM,), 2 * H),
        wu=u(ks[10], (1, ATTN_DIM), ATTN_DIM), bu=u(ks[11], (1,), ATTN_DIM),
        # f1: Linear(2H, 128) ... Linear(128, n_class)
        wf1=u(ks[12], (ATTN_DIM, 2 * H), 2 * H), bf1=u(ks[13], (ATTN_DIM,), 2 * H),
        wf2=u(ks[14], (N_CLASS, ATTN_DIM), ATTN_DIM), bf2=u(ks[15], (N_CLASS,), ATTN_DIM),
    )


def _reference_forward(x, params, h0, c0):
    """Pure-JAX f32 reference with the original module semantics."""
    B, S, _ = x.shape
    H = HIDDEN_SIZE_LSTM

    def cell(h, c, xt, w_ih, w_hh, b_ih, b_hh):
        g = xt @ w_ih.T + h @ w_hh.T + b_ih + b_hh
        i = jax.nn.sigmoid(g[:, :H]); f = jax.nn.sigmoid(g[:, H:2 * H])
        gg = jnp.tanh(g[:, 2 * H:3 * H]); o = jax.nn.sigmoid(g[:, 3 * H:])
        c = f * c + i * gg
        return o * jnp.tanh(c), c

    hs_f = []
    h, c = h0[0], c0[0]
    for t in range(S):
        h, c = cell(h, c, x[:, t], params["w_ih_f"], params["w_hh_f"],
                    params["b_ih_f"], params["b_hh_f"])
        hs_f.append(h)
    hs_b = [None] * S
    h, c = h0[1], c0[1]
    for t in range(S - 1, -1, -1):
        h, c = cell(h, c, x[:, t], params["w_ih_b"], params["w_hh_b"],
                    params["b_ih_b"], params["b_hh_b"])
        hs_b[t] = h
    out = jnp.concatenate([jnp.stack(hs_f, 1), jnp.stack(hs_b, 1)], axis=-1)
    u = jnp.tanh(out.reshape(B * S, 2 * H) @ params["w1"].T + params["b1"])
    score = (u @ params["wu"].T + params["bu"]).reshape(B, S, 1)
    attn = jax.nn.softmax(score, axis=-1)            # identically 1.0 (dim=-1 bug)
    pooled = jnp.sum(attn * out, axis=1)
    z = jnp.maximum(pooled @ params["wf1"].T + params["bf1"], 0.0)
    logits = z @ params["wf2"].T + params["bf2"]
    return jax.nn.softmax(logits, axis=-1)


if __name__ == "__main__":
    key = jax.random.PRNGKey(0)
    k_x, k_p, k_h, k_c = jax.random.split(key, 4)

    B, S = 2, 8
    # x stands in for bert(...).last_hidden_state (after identity dropout).
    x = jax.random.normal(k_x, (B, S, HIDDEN_SIZE), jnp.float32)
    params = init_params(k_p)
    # The module draws fresh randn h0/c0 every forward; here drawn deterministically.
    h0 = jax.random.normal(k_h, (2, B, HIDDEN_SIZE_LSTM), jnp.float32)
    c0 = jax.random.normal(k_c, (2, B, HIDDEN_SIZE_LSTM), jnp.float32)

    out = bert_lstm_attention_forward(x, params, h0, c0, batch_tile=1)
    out = jax.block_until_ready(out)

    assert out.shape == (B, N_CLASS)
    assert bool(jnp.all(jnp.isfinite(out)))
    assert bool(jnp.all(jnp.abs(jnp.sum(out, axis=-1) - 1.0) < 1e-3))

    ref = _reference_forward(x, params, h0, c0)
    max_err = float(jnp.max(jnp.abs(out - ref)))
    assert max_err < 3e-2, f"mismatch vs f32 reference: {max_err}"

    print("KERNEL_OK")
</pallas_src>

<mosaic_0001>
module attributes {stable_mosaic.version = 11 : i64} {
  func.func @_bert_lstm_attention_kernel(%arg0: i32, %arg1: memref<1x8x32xbf16, #tpu.memory_space<vmem>>, %arg2: memref<1x4x16xf32, #tpu.memory_space<vmem>>, %arg3: memref<32x128xbf16, #tpu.memory_space<vmem>>, %arg4: memref<1x128xf32, #tpu.memory_space<vmem>>, %arg5: memref<2x16x64xbf16, #tpu.memory_space<vmem>>, %arg6: memref<32x128xbf16, #tpu.memory_space<vmem>>, %arg7: memref<1x128xf32, #tpu.memory_space<vmem>>, %arg8: memref<128x128xbf16, #tpu.memory_space<vmem>>, %arg9: memref<1x128xf32, #tpu.memory_space<vmem>>, %arg10: memref<1x1x128xf32, #tpu.memory_space<vmem>>) attributes {dimension_semantics = [#tpu.dimension_semantics<parallel>], iteration_bounds = array<i64: 2>, scalar_prefetch = 0 : i64, scratch_operands = 0 : i64, tpu.core_type = #tpu.core_type<tc>, window_params = [{transform_indices = @transform_0, window_bounds = array<i64: 1, 8, 32>}, {transform_indices = @transform_1, window_bounds = array<i64: 1, 4, 16>}, {pipeline_mode = #tpu.pipeline_mode<synchronous>, transform_indices = @transform_2, window_bounds = array<i64: 32, 128>}, {pipeline_mode = #tpu.pipeline_mode<synchronous>, transform_indices = @transform_3, window_bounds = array<i64: 1, 128>}, {pipeline_mode = #tpu.pipeline_mode<synchronous>, transform_indices = @transform_4, window_bounds = array<i64: 2, 16, 64>}, {pipeline_mode = #tpu.pipeline_mode<synchronous>, transform_indices = @transform_5, window_bounds = array<i64: 32, 128>}, {pipeline_mode = #tpu.pipeline_mode<synchronous>, transform_indices = @transform_6, window_bounds = array<i64: 1, 128>}, {pipeline_mode = #tpu.pipeline_mode<synchronous>, transform_indices = @transform_7, window_bounds = array<i64: 128, 128>}, {pipeline_mode = #tpu.pipeline_mode<synchronous>, transform_indices = @transform_8, window_bounds = array<i64: 1, 128>}, {transform_indices = @transform_9, window_bounds = array<i64: 1, 1, 128>}]} {
    %c0 = arith.constant 0 : index
    %c0_0 = arith.constant 0 : index
    %c0_1 = arith.constant 0 : index
    %0 = vector.load %arg1[%c0, %c0_0, %c0_1] : memref<1x8x32xbf16, #tpu.memory_space<vmem>>, vector<1x8x32xbf16>
    %1 = vector.shape_cast %0 : vector<1x8x32xbf16> to vector<8x32xbf16>
    %c0_2 = arith.constant 0 : index
    %c0_3 = arith.constant 0 : index
    %2 = vector.load %arg3[%c0_2, %c0_3] : memref<32x128xbf16, #tpu.memory_space<vmem>>, vector<32x128xbf16>
    %cst = arith.constant dense<0.000000e+00> : vector<8x128xf32>
    %3 = tpu.matmul %1, %2, %cst {dimension_numbers = #tpu.dot_dimension_numbers<[1], [0], [0], [1], [0, 0, 1, 1], [], []>} : vector<8x32xbf16>, vector<32x128xbf16>, vector<8x128xf32> -> vector<8x128xf32>
    %c0_4 = arith.constant 0 : index
    %c0_5 = arith.constant 0 : index
    %4 = vector.load %arg4[%c0_4, %c0_5] : memref<1x128xf32, #tpu.memory_space<vmem>>, vector<1x128xf32>
    %5 = vector.broadcast %4 : vector<1x128xf32> to vector<8x128xf32>
    %6 = arith.addf %3, %5 : vector<8x128xf32>
    %7 = vector.shape_cast %6 : vector<8x128xf32> to vector<1x8x128xf32>
    %c0_6 = arith.constant 0 : index
    %c0_7 = arith.constant 0 : index
    %c0_8 = arith.constant 0 : index
    %8 = vector.load %arg5[%c0_6, %c0_7, %c0_8] : memref<2x16x64xbf16, #tpu.memory_space<vmem>>, vector<1x16x64xbf16>
    %9 = vector.shape_cast %8 : vector<1x16x64xbf16> to vector<16x64xbf16>
    %c1 = arith.constant 1 : index
    %c0_9 = arith.constant 0 : index
    %c0_10 = arith.constant 0 : index
    %10 = vector.load %arg5[%c1, %c0_9, %c0_10] : memref<2x16x64xbf16, #tpu.memory_space<vmem>>, vector<1x16x64xbf16>
    %11 = vector.shape_cast %10 : vector<1x16x64xbf16> to vector<16x64xbf16>
    %c0_11 = arith.constant 0 : index
    %c0_12 = arith.constant 0 : index
    %c0_13 = arith.constant 0 : index
    %12 = vector.load %arg2[%c0_11, %c0_12, %c0_13] : memref<1x4x16xf32, #tpu.memory_space<vmem>>, vector<1x1x16xf32>
    %13 = vector.shape_cast %12 : vector<1x1x16xf32> to vector<1x16xf32>
    %c0_14 = arith.constant 0 : index
    %c1_15 = arith.constant 1 : index
    %c0_16 = arith.constant 0 : index
    %14 = vector.load %arg2[%c0_14, %c1_15, %c0_16] : memref<1x4x16xf32, #tpu.memory_space<vmem>>, vector<1x1x16xf32>
    %15 = vector.shape_cast %14 : vector<1x1x16xf32> to vector<1x16xf32>
    %cst_17 = arith.constant 0.000000e+00 : f32
    %16 = vector.broadcast %cst_17 : f32 to vector<1x16xf32>
    %17 = vector.extract_strided_slice %7 {offsets = [0, 0, 0], sizes = [1, 1, 64], strides = [1, 1, 1]} : vector<1x8x128xf32> to vector<1x1x64xf32>
    %18 = vector.shape_cast %17 : vector<1x1x64xf32> to vector<1x64xf32>
    %19 = arith.truncf %13 : vector<1x16xf32> to vector<1x16xbf16>
    %cst_18 = arith.constant dense<0.000000e+00> : vector<1x64xf32>
    %20 = tpu.matmul %19, %9, %cst_18 {dimension_numbers = #tpu.dot_dimension_numbers<[1], [0], [0], [1], [0, 0, 1, 1], [], []>} : vector<1x16xbf16>, vector<16x64xbf16>, vector<1x64xf32> -> vector<1x64xf32>
    %21 = arith.addf %18, %20 : vector<1x64xf32>
    %22 = vector.extract_strided_slice %21 {offsets = [0, 0], sizes = [1, 48], strides = [1, 1]} : vector<1x64xf32> to vector<1x48xf32>
    %23 = arith.negf %22 : vector<1x48xf32>
    %24 = math.exp %23 : vector<1x48xf32>
    %cst_19 = arith.constant 1.000000e+00 : f32
    %25 = vector.broadcast %cst_19 : f32 to vector<1x48xf32>
    %26 = arith.addf %25, %24 : vector<1x48xf32>
    %27 = arith.divf %25, %26 : vector<1x48xf32>
    %28 = vector.extract_strided_slice %27 {offsets = [0, 0], sizes = [1, 16], strides = [1, 1]} : vector<1x48xf32> to vector<1x16xf32>
    %29 = vector.extract_strided_slice %27 {offsets = [0, 16], sizes = [1, 16], strides = [1, 1]} : vector<1x48xf32> to vector<1x16xf32>
    %30 = vector.extract_strided_slice %27 {offsets = [0, 32], sizes = [1, 16], strides = [1, 1]} : vector<1x48xf32> to vector<1x16xf32>
    %31 = vector.extract_strided_slice %21 {offsets = [0, 48], sizes = [1, 16], strides = [1, 1]} : vector<1x64xf32> to vector<1x16xf32>
    %32 = math.tanh %31 : vector<1x16xf32>
    %33 = arith.mulf %29, %15 : vector<1x16xf32>
    %34 = arith.mulf %28, %32 : vector<1x16xf32>
    %35 = arith.addf %33, %34 : vector<1x16xf32>
    %36 = math.tanh %35 : vector<1x16xf32>
    %37 = arith.mulf %30, %36 : vector<1x16xf32>
    %38 = arith.addf %16, %37 : vector<1x16xf32>
    %39 = vector.extract_strided_slice %7 {offsets = [0, 1, 0], sizes = [1, 1, 64], strides = [1, 1, 1]} : vector<1x8x128xf32> to vector<1x1x64xf32>
    %40 = vector.shape_cast %39 : vector<1x1x64xf32> to vector<1x64xf32>
    %41 = arith.truncf %37 : vector<1x16xf32> to vector<1x16xbf16>
    %cst_20 = arith.constant dense<0.000000e+00> : vector<1x64xf32>
    %42 = tpu.matmul %41, %9, %cst_20 {dimension_numbers = #tpu.dot_dimension_numbers<[1], [0], [0], [1], [0, 0, 1, 1], [], []>} : vector<1x16xbf16>, vector<16x64xbf16>, vector<1x64xf32> -> vector<1x64xf32>
    %43 = arith.addf %40, %42 : vector<1x64xf32>
    %44 = vector.extract_strided_slice %43 {offsets = [0, 0], sizes = [1, 48], strides = [1, 1]} : vector<1x64xf32> to vector<1x48xf32>
    %45 = arith.negf %44 : vector<1x48xf32>
    %46 = math.exp %45 : vector<1x48xf32>
    %cst_21 = arith.constant 1.000000e+00 : f32
    %47 = vector.broadcast %cst_21 : f32 to vector<1x48xf32>
    %48 = arith.addf %47, %46 : vector<1x48xf32>
    %49 = arith.divf %47, %48 : vector<1x48xf32>
    %50 = vector.extract_strided_slice %49 {offsets = [0, 0], sizes = [1, 16], strides = [1, 1]} : vector<1x48xf32> to vector<1x16xf32>
    %51 = vector.extract_strided_slice %49 {offsets = [0, 16], sizes = [1, 16], strides = [1, 1]} : vector<1x48xf32> to vector<1x16xf32>
    %52 = vector.extract_strided_slice %49 {offsets = [0, 32], sizes = [1, 16], strides = [1, 1]} : vector<1x48xf32> to vector<1x16xf32>
    %53 = vector.extract_strided_slice %43 {offsets = [0, 48], sizes = [1, 16], strides = [1, 1]} : vector<1x64xf32> to vector<1x16xf32>
    %54 = math.tanh %53 : vector<1x16xf32>
    %55 = arith.mulf %51, %35 : vector<1x16xf32>
    %56 = arith.mulf %50, %54 : vector<1x16xf32>
    %57 = arith.addf %55, %56 : vector<1x16xf32>
    %58 = math.tanh %57 : vector<1x16xf32>
    %59 = arith.mulf %52, %58 : vector<1x16xf32>
    %60 = arith.addf %38, %59 : vector<1x16xf32>
    %61 = vector.extract_strided_slice %7 {offsets = [0, 2, 0], sizes = [1, 1, 64], strides = [1, 1, 1]} : vector<1x8x128xf32> to vector<1x1x64xf32>
    %62 = vector.shape_cast %61 : vector<1x1x64xf32> to vector<1x64xf32>
    %63 = arith.truncf %59 : vector<1x16xf32> to vector<1x16xbf16>
    %cst_22 = arith.constant dense<0.000000e+00> : vector<1x64xf32>
    %64 = tpu.matmul %63, %9, %cst_22 {dimension_numbers = #tpu.dot_dimension_numbers<[1], [0], [0], [1], [0, 0, 1, 1], [], []>} : vector<1x16xbf16>, vector<16x64xbf16>, vector<1x64xf32> -> vector<1x64xf32>
    %65 = arith.addf %62, %64 : vector<1x64xf32>
    %66 = vector.extract_strided_slice %65 {offsets = [0, 0], sizes = [1, 48], strides = [1, 1]} : vector<1x64xf32> to vector<1x48xf32>
    %67 = arith.negf %66 : vector<1x48xf32>
    %68 = math.exp %67 : vector<1x48xf32>
    %cst_23 = arith.constant 1.000000e+00 : f32
    %69 = vector.broadcast %cst_23 : f32 to vector<1x48xf32>
    %70 = arith.addf %69, %68 : vector<1x48xf32>
    %71 = arith.divf %69, %70 : vector<1x48xf32>
    %72 = vector.extract_strided_slice %71 {offsets = [0, 0], sizes = [1, 16], strides = [1, 1]} : vector<1x48xf32> to vector<1x16xf32>
    %73 = vector.extract_strided_slice %71 {offsets = [0, 16], sizes = [1, 16], strides = [1, 1]} : vector<1x48xf32> to vector<1x16xf32>
    %74 = vector.extract_strided_slice %71 {offsets = [0, 32], sizes = [1, 16], strides = [1, 1]} : vector<1x48xf32> to vector<1x16xf32>
    %75 = vector.extract_strided_slice %65 {offsets = [0, 48], sizes = [1, 16], strides = [1, 1]} : vector<1x64xf32> to vector<1x16xf32>
    %76 = math.tanh %75 : vector<1x16xf32>
    %77 = arith.mulf %73, %57 : vector<1x16xf32>
    %78 = arith.mulf %72, %76 : vector<1x16xf32>
    %79 = arith.addf %77, %78 : vector<1x16xf32>
    %80 = math.tanh %79 : vector<1x16xf32>
    %81 = arith.mulf %74, %80 : vector<1x16xf32>
    %82 = arith.addf %60, %81 : vector<1x16xf32>
    %83 = vector.extract_strided_slice %7 {offsets = [0, 3, 0], sizes = [1, 1, 64], strides = [1, 1, 1]} : vector<1x8x128xf32> to vector<1x1x64xf32>
    %84 = vector.shape_cast %83 : vector<1x1x64xf32> to vector<1x64xf32>
    %85 = arith.truncf %81 : vector<1x16xf32> to vector<1x16xbf16>
    %cst_24 = arith.constant dense<0.000000e+00> : vector<1x64xf32>
    %86 = tpu.matmul %85, %9, %cst_24 {dimension_numbers = #tpu.dot_dimension_numbers<[1], [0], [0], [1], [0, 0, 1, 1], [], []>} : vector<1x16xbf16>, vector<16x64xbf16>, vector<1x64xf32> -> vector<1x64xf32>
    %87 = arith.addf %84, %86 : vector<1x64xf32>
    %88 = vector.extract_strided_slice %87 {offsets = [0, 0], sizes = [1, 48], strides = [1, 1]} : vector<1x64xf32> to vector<1x48xf32>
    %89 = arith.negf %88 : vector<1x48xf32>
    %90 = math.exp %89 : vector<1x48xf32>
    %cst_25 = arith.constant 1.000000e+00 : f32
    %91 = vector.broadcast %cst_25 : f32 to vector<1x48xf32>
    %92 = arith.addf %91, %90 : vector<1x48xf32>
    %93 = arith.divf %91, %92 : vector<1x48xf32>
    %94 = vector.extract_strided_slice %93 {offsets = [0, 0], sizes = [1, 16], strides = [1, 1]} : vector<1x48xf32> to vector<1x16xf32>
    %95 = vector.extract_strided_slice %93 {offsets = [0, 16], sizes = [1, 16], strides = [1, 1]} : vector<1x48xf32> to vector<1x16xf32>
    %96 = vector.extract_strided_slice %93 {offsets = [0, 32], sizes = [1, 16], strides = [1, 1]} : vector<1x48xf32> to vector<1x16xf32>
    %97 = vector.extract_strided_slice %87 {offsets = [0, 48], sizes = [1, 16], strides = [1, 1]} : vector<1x64xf32> to vector<1x16xf32>
    %98 = math.tanh %97 : vector<1x16xf32>
    %99 = arith.mulf %95, %79 : vector<1x16xf32>
    %100 = arith.mulf %94, %98 : vector<1x16xf32>
    %101 = arith.addf %99, %100 : vector<1x16xf32>
    %102 = math.tanh %101 : vector<1x16xf32>
    %103 = arith.mulf %96, %102 : vector<1x16xf32>
    %104 = arith.addf %82, %103 : vector<1x16xf32>
    %105 = vector.extract_strided_slice %7 {offsets = [0, 4, 0], sizes = [1, 1, 64], strides = [1, 1, 1]} : vector<1x8x128xf32> to vector<1x1x64xf32>
    %106 = vector.shape_cast %105 : vector<1x1x64xf32> to vector<1x64xf32>
    %107 = arith.truncf %103 : vector<1x16xf32> to vector<1x16xbf16>
    %cst_26 = arith.constant dense<0.000000e+00> : vector<1x64xf32>
    %108 = tpu.matmul %107, %9, %cst_26 {dimension_numbers = #tpu.dot_dimension_numbers<[1], [0], [0], [1], [0, 0, 1, 1], [], []>} : vector<1x16xbf16>, vector<16x64xbf16>, vector<1x64xf32> -> vector<1x64xf32>
    %109 = arith.addf %106, %108 : vector<1x64xf32>
    %110 = vector.extract_strided_slice %109 {offsets = [0, 0], sizes = [1, 48], strides = [1, 1]} : vector<1x64xf32> to vector<1x48xf32>
    %111 = arith.negf %110 : vector<1x48xf32>
    %112 = math.exp %111 : vector<1x48xf32>
    %cst_27 = arith.constant 1.000000e+00 : f32
    %113 = vector.broadcast %cst_27 : f32 to vector<1x48xf32>
    %114 = arith.addf %113, %112 : vector<1x48xf32>
    %115 = arith.divf %113, %114 : vector<1x48xf32>
    %116 = vector.extract_strided_slice %115 {offsets = [0, 0], sizes = [1, 16], strides = [1, 1]} : vector<1x48xf32> to vector<1x16xf32>
    %117 = vector.extract_strided_slice %115 {offsets = [0, 16], sizes = [1, 16], strides = [1, 1]} : vector<1x48xf32> to vector<1x16xf32>
    %118 = vector.extract_strided_slice %115 {offsets = [0, 32], sizes = [1, 16], strides = [1, 1]} : vector<1x48xf32> to vector<1x16xf32>
    %119 = vector.extract_strided_slice %109 {offsets = [0, 48], sizes = [1, 16], strides = [1, 1]} : vector<1x64xf32> to vector<1x16xf32>
    %120 = math.tanh %119 : vector<1x16xf32>
    %121 = arith.mulf %117, %101 : vector<1x16xf32>
    %122 = arith.mulf %116, %120 : vector<1x16xf32>
    %123 = arith.addf %121, %122 : vector<1x16xf32>
    %124 = math.tanh %123 : vector<1x16xf32>
    %125 = arith.mulf %118, %124 : vector<1x16xf32>
    %126 = arith.addf %104, %125 : vector<1x16xf32>
    %127 = vector.extract_strided_slice %7 {offsets = [0, 5, 0], sizes = [1, 1, 64], strides = [1, 1, 1]} : vector<1x8x128xf32> to vector<1x1x64xf32>
    %128 = vector.shape_cast %127 : vector<1x1x64xf32> to vector<1x64xf32>
    %129 = arith.truncf %125 : vector<1x16xf32> to vector<1x16xbf16>
    %cst_28 = arith.constant dense<0.000000e+00> : vector<1x64xf32>
    %130 = tpu.matmul %129, %9, %cst_28 {dimension_numbers = #tpu.dot_dimension_numbers<[1], [0], [0], [1], [0, 0, 1, 1], [], []>} : vector<1x16xbf16>, vector<16x64xbf16>, vector<1x64xf32> -> vector<1x64xf32>
    %131 = arith.addf %128, %130 : vector<1x64xf32>
    %132 = vector.extract_strided_slice %131 {offsets = [0, 0], sizes = [1, 48], strides = [1, 1]} : vector<1x64xf32> to vector<1x48xf32>
    %133 = arith.negf %132 : vector<1x48xf32>
    %134 = math.exp %133 : vector<1x48xf32>
    %cst_29 = arith.constant 1.000000e+00 : f32
    %135 = vector.broadcast %cst_29 : f32 to vector<1x48xf32>
    %136 = arith.addf %135, %134 : vector<1x48xf32>
    %137 = arith.divf %135, %136 : vector<1x48xf32>
    %138 = vector.extract_strided_slice %137 {offsets = [0, 0], sizes = [1, 16], strides = [1, 1]} : vector<1x48xf32> to vector<1x16xf32>
    %139 = vector.extract_strided_slice %137 {offsets = [0, 16], sizes = [1, 16], strides = [1, 1]} : vector<1x48xf32> to vector<1x16xf32>
    %140 = vector.extract_strided_slice %137 {offsets = [0, 32], sizes = [1, 16], strides = [1, 1]} : vector<1x48xf32> to vector<1x16xf32>
    %141 = vector.extract_strided_slice %131 {offsets = [0, 48], sizes = [1, 16], strides = [1, 1]} : vector<1x64xf32> to vector<1x16xf32>
    %142 = math.tanh %141 : vector<1x16xf32>
    %143 = arith.mulf %139, %123 : vector<1x16xf32>
    %144 = arith.mulf %138, %142 : vector<1x16xf32>
    %145 = arith.addf %143, %144 : vector<1x16xf32>
    %146 = math.tanh %145 : vector<1x16xf32>
    %147 = arith.mulf %140, %146 : vector<1x16xf32>
    %148 = arith.addf %126, %147 : vector<1x16xf32>
    %149 = vector.extract_strided_slice %7 {offsets = [0, 6, 0], sizes = [1, 1, 64], strides = [1, 1, 1]} : vector<1x8x128xf32> to vector<1x1x64xf32>
    %150 = vector.shape_cast %149 : vector<1x1x64xf32> to vector<1x64xf32>
    %151 = arith.truncf %147 : vector<1x16xf32> to vector<1x16xbf16>
    %cst_30 = arith.constant dense<0.000000e+00> : vector<1x64xf32>
    %152 = tpu.matmul %151, %9, %cst_30 {dimension_numbers = #tpu.dot_dimension_numbers<[1], [0], [0], [1], [0, 0, 1, 1], [], []>} : vector<1x16xbf16>, vector<16x64xbf16>, vector<1x64xf32> -> vector<1x64xf32>
    %153 = arith.addf %150, %152 : vector<1x64xf32>
    %154 = vector.extract_strided_slice %153 {offsets = [0, 0], sizes = [1, 48], strides = [1, 1]} : vector<1x64xf32> to vector<1x48xf32>
    %155 = arith.negf %154 : vector<1x48xf32>
    %156 = math.exp %155 : vector<1x48xf32>
    %cst_31 = arith.constant 1.000000e+00 : f32
    %157 = vector.broadcast %cst_31 : f32 to vector<1x48xf32>
    %158 = arith.addf %157, %156 : vector<1x48xf32>
    %159 = arith.divf %157, %158 : vector<1x48xf32>
    %160 = vector.extract_strided_slice %159 {offsets = [0, 0], sizes = [1, 16], strides = [1, 1]} : vector<1x48xf32> to vector<1x16xf32>
    %161 = vector.extract_strided_slice %159 {offsets = [0, 16], sizes = [1, 16], strides = [1, 1]} : vector<1x48xf32> to vector<1x16xf32>
    %162 = vector.extract_strided_slice %159 {offsets = [0, 32], sizes = [1, 16], strides = [1, 1]} : vector<1x48xf32> to vector<1x16xf32>
    %163 = vector.extract_strided_slice %153 {offsets = [0, 48], sizes = [1, 16], strides = [1, 1]} : vector<1x64xf32> to vector<1x16xf32>
    %164 = math.tanh %163 : vector<1x16xf32>
    %165 = arith.mulf %161, %145 : vector<1x16xf32>
    %166 = arith.mulf %160, %164 : vector<1x16xf32>
    %167 = arith.addf %165, %166 : vector<1x16xf32>
    %168 = math.tanh %167 : vector<1x16xf32>
    %169 = arith.mulf %162, %168 : vector<1x16xf32>
    %170 = arith.addf %148, %169 : vector<1x16xf32>
    %171 = vector.extract_strided_slice %7 {offsets = [0, 7, 0], sizes = [1, 1, 64], strides = [1, 1, 1]} : vector<1x8x128xf32> to vector<1x1x64xf32>
    %172 = vector.shape_cast %171 : vector<1x1x64xf32> to vector<1x64xf32>
    %173 = arith.truncf %169 : vector<1x16xf32> to vector<1x16xbf16>
    %cst_32 = arith.constant dense<0.000000e+00> : vector<1x64xf32>
    %174 = tpu.matmul %173, %9, %cst_32 {dimension_numbers = #tpu.dot_dimension_numbers<[1], [0], [0], [1], [0, 0, 1, 1], [], []>} : vector<1x16xbf16>, vector<16x64xbf16>, vector<1x64xf32> -> vector<1x64xf32>
    %175 = arith.addf %172, %174 : vector<1x64xf32>
    %176 = vector.extract_strided_slice %175 {offsets = [0, 0], sizes = [1, 48], strides = [1, 1]} : vector<1x64xf32> to vector<1x48xf32>
    %177 = arith.negf %176 : vector<1x48xf32>
    %178 = math.exp %177 : vector<1x48xf32>
    %cst_33 = arith.constant 1.000000e+00 : f32
    %179 = vector.broadcast %cst_33 : f32 to vector<1x48xf32>
    %180 = arith.addf %179, %178 : vector<1x48xf32>
    %181 = arith.divf %179, %180 : vector<1x48xf32>
    %182 = vector.extract_strided_slice %181 {offsets = [0, 0], sizes = [1, 16], strides = [1, 1]} : vector<1x48xf32> to vector<1x16xf32>
    %183 = vector.extract_strided_slice %181 {offsets = [0, 16], sizes = [1, 16], strides = [1, 1]} : vector<1x48xf32> to vector<1x16xf32>
    %184 = vector.extract_strided_slice %181 {offsets = [0, 32], sizes = [1, 16], strides = [1, 1]} : vector<1x48xf32> to vector<1x16xf32>
    %185 = vector.extract_strided_slice %175 {offsets = [0, 48], sizes = [1, 16], strides = [1, 1]} : vector<1x64xf32> to vector<1x16xf32>
    %186 = math.tanh %185 : vector<1x16xf32>
    %187 = arith.mulf %183, %167 : vector<1x16xf32>
    %188 = arith.mulf %182, %186 : vector<1x16xf32>
    %189 = arith.addf %187, %188 : vector<1x16xf32>
    %190 = math.tanh %189 : vector<1x16xf32>
    %191 = arith.mulf %184, %190 : vector<1x16xf32>
    %192 = arith.addf %170, %191 : vector<1x16xf32>
    %c0_34 = arith.constant 0 : index
    %c2 = arith.constant 2 : index
    %c0_35 = arith.constant 0 : index
    %193 = vector.load %arg2[%c0_34, %c2, %c0_35] : memref<1x4x16xf32, #tpu.memory_space<vmem>>, vector<1x1x16xf32>
    %194 = vector.shape_cast %193 : vector<1x1x16xf32> to vector<1x16xf32>
    %c0_36 = arith.constant 0 : index
    %c3 = arith.constant 3 : index
    %c0_37 = arith.constant 0 : index
    %195 = vector.load %arg2[%c0_36, %c3, %c0_37] : memref<1x4x16xf32, #tpu.memory_space<vmem>>, vector<1x1x16xf32>
    %196 = vector.shape_cast %195 : vector<1x1x16xf32> to vector<1x16xf32>
    %cst_38 = arith.constant 0.000000e+00 : f32
    %197 = vector.broadcast %cst_38 : f32 to vector<1x16xf32>
    %198 = vector.extract_strided_slice %7 {offsets = [0, 7, 64], sizes = [1, 1, 64], strides = [1, 1, 1]} : vector<1x8x128xf32> to vector<1x1x64xf32>
    %199 = vector.shape_cast %198 : vector<1x1x64xf32> to vector<1x64xf32>
    %200 = arith.truncf %194 : vector<1x16xf32> to vector<1x16xbf16>
    %cst_39 = arith.constant dense<0.000000e+00> : vector<1x64xf32>
    %201 = tpu.matmul %200, %11, %cst_39 {dimension_numbers = #tpu.dot_dimension_numbers<[1], [0], [0], [1], [0, 0, 1, 1], [], []>} : vector<1x16xbf16>, vector<16x64xbf16>, vector<1x64xf32> -> vector<1x64xf32>
    %202 = arith.addf %199, %201 : vector<1x64xf32>
    %203 = vector.extract_strided_slice %202 {offsets = [0, 0], sizes = [1, 48], strides = [1, 1]} : vector<1x64xf32> to vector<1x48xf32>
    %204 = arith.negf %203 : vector<1x48xf32>
    %205 = math.exp %204 : vector<1x48xf32>
    %cst_40 = arith.constant 1.000000e+00 : f32
    %206 = vector.broadcast %cst_40 : f32 to vector<1x48xf32>
    %207 = arith.addf %206, %205 : vector<1x48xf32>
    %208 = arith.divf %206, %207 : vector<1x48xf32>
    %209 = vector.extract_strided_slice %208 {offsets = [0, 0], sizes = [1, 16], strides = [1, 1]} : vector<1x48xf32> to vector<1x16xf32>
    %210 = vector.extract_strided_slice %208 {offsets = [0, 16], sizes = [1, 16], strides = [1, 1]} : vector<1x48xf32> to vector<1x16xf32>
    %211 = vector.extract_strided_slice %208 {offsets = [0, 32], sizes = [1, 16], strides = [1, 1]} : vector<1x48xf32> to vector<1x16xf32>
    %212 = vector.extract_strided_slice %202 {offsets = [0, 48], sizes = [1, 16], strides = [1, 1]} : vector<1x64xf32> to vector<1x16xf32>
    %213 = math.tanh %212 : vector<1x16xf32>
    %214 = arith.mulf %210, %196 : vector<1x16xf32>
    %215 = arith.mulf %209, %213 : vector<1x16xf32>
    %216 = arith.addf %214, %215 : vector<1x16xf32>
    %217 = math.tanh %216 : vector<1x16xf32>
    %218 = arith.mulf %211, %217 : vector<1x16xf32>
    %219 = arith.addf %197, %218 : vector<1x16xf32>
    %220 = vector.extract_strided_slice %7 {offsets = [0, 6, 64], sizes = [1, 1, 64], strides = [1, 1, 1]} : vector<1x8x128xf32> to vector<1x1x64xf32>
    %221 = vector.shape_cast %220 : vector<1x1x64xf32> to vector<1x64xf32>
    %222 = arith.truncf %218 : vector<1x16xf32> to vector<1x16xbf16>
    %cst_41 = arith.constant dense<0.000000e+00> : vector<1x64xf32>
    %223 = tpu.matmul %222, %11, %cst_41 {dimension_numbers = #tpu.dot_dimension_numbers<[1], [0], [0], [1], [0, 0, 1, 1], [], []>} : vector<1x16xbf16>, vector<16x64xbf16>, vector<1x64xf32> -> vector<1x64xf32>
    %224 = arith.addf %221, %223 : vector<1x64xf32>
    %225 = vector.extract_strided_slice %224 {offsets = [0, 0], sizes = [1, 48], strides = [1, 1]} : vector<1x64xf32> to vector<1x48xf32>
    %226 = arith.negf %225 : vector<1x48xf32>
    %227 = math.exp %226 : vector<1x48xf32>
    %cst_42 = arith.constant 1.000000e+00 : f32
    %228 = vector.broadcast %cst_42 : f32 to vector<1x48xf32>
    %229 = arith.addf %228, %227 : vector<1x48xf32>
    %230 = arith.divf %228, %229 : vector<1x48xf32>
    %231 = vector.extract_strided_slice %230 {offsets = [0, 0], sizes = [1, 16], strides = [1, 1]} : vector<1x48xf32> to vector<1x16xf32>
    %232 = vector.extract_strided_slice %230 {offsets = [0, 16], sizes = [1, 16], strides = [1, 1]} : vector<1x48xf32> to vector<1x16xf32>
    %233 = vector.extract_strided_slice %230 {offsets = [0, 32], sizes = [1, 16], strides = [1, 1]} : vector<1x48xf32> to vector<1x16xf32>
    %234 = vector.extract_strided_slice %224 {offsets = [0, 48], sizes = [1, 16], strides = [1, 1]} : vector<1x64xf32> to vector<1x16xf32>
    %235 = math.tanh %234 : vector<1x16xf32>
    %236 = arith.mulf %232, %216 : vector<1x16xf32>
    %237 = arith.mulf %231, %235 : vector<1x16xf32>
    %238 = arith.addf %236, %237 : vector<1x16xf32>
    %239 = math.tanh %238 : vector<1x16xf32>
    %240 = arith.mulf %233, %239 : vector<1x16xf32>
    %241 = arith.addf %219, %240 : vector<1x16xf32>
    %242 = vector.extract_strided_slice %7 {offsets = [0, 5, 64], sizes = [1, 1, 64], strides = [1, 1, 1]} : vector<1x8x128xf32> to vector<1x1x64xf32>
    %243 = vector.shape_cast %242 : vector<1x1x64xf32> to vector<1x64xf32>
    %244 = arith.truncf %240 : vector<1x16xf32> to vector<1x16xbf16>
    %cst_43 = arith.constant dense<0.000000e+00> : vector<1x64xf32>
    %245 = tpu.matmul %244, %11, %cst_43 {dimension_numbers = #tpu.dot_dimension_numbers<[1], [0], [0], [1], [0, 0, 1, 1], [], []>} : vector<1x16xbf16>, vector<16x64xbf16>, vector<1x64xf32> -> vector<1x64xf32>
    %246 = arith.addf %243, %245 : vector<1x64xf32>
    %247 = vector.extract_strided_slice %246 {offsets = [0, 0], sizes = [1, 48], strides = [1, 1]} : vector<1x64xf32> to vector<1x48xf32>
    %248 = arith.negf %247 : vector<1x48xf32>
    %249 = math.exp %248 : vector<1x48xf32>
    %cst_44 = arith.constant 1.000000e+00 : f32
    %250 = vector.broadcast %cst_44 : f32 to vector<1x48xf32>
    %251 = arith.addf %250, %249 : vector<1x48xf32>
    %252 = arith.divf %250, %251 : vector<1x48xf32>
    %253 = vector.extract_strided_slice %252 {offsets = [0, 0], sizes = [1, 16], strides = [1, 1]} : vector<1x48xf32> to vector<1x16xf32>
    %254 = vector.extract_strided_slice %252 {offsets = [0, 16], sizes = [1, 16], strides = [1, 1]} : vector<1x48xf32> to vector<1x16xf32>
    %255 = vector.extract_strided_slice %252 {offsets = [0, 32], sizes = [1, 16], strides = [1, 1]} : vector<1x48xf32> to vector<1x16xf32>
    %256 = vector.extract_strided_slice %246 {offsets = [0, 48], sizes = [1, 16], strides = [1, 1]} : vector<1x64xf32> to vector<1x16xf32>
    %257 = math.tanh %256 : vector<1x16xf32>
    %258 = arith.mulf %254, %238 : vector<1x16xf32>
    %259 = arith.mulf %253, %257 : vector<1x16xf32>
    %260 = arith.addf %258, %259 : vector<1x16xf32>
    %261 = math.tanh %260 : vector<1x16xf32>
    %262 = arith.mulf %255, %261 : vector<1x16xf32>
    %263 = arith.addf %241, %262 : vector<1x16xf32>
    %264 = vector.extract_strided_slice %7 {offsets = [0, 4, 64], sizes = [1, 1, 64], strides = [1, 1, 1]} : vector<1x8x128xf32> to vector<1x1x64xf32>
    %265 = vector.shape_cast %264 : vector<1x1x64xf32> to vector<1x64xf32>
    %266 = arith.truncf %262 : vector<1x16xf32> to vector<1x16xbf16>
    %cst_45 = arith.constant dense<0.000000e+00> : vector<1x64xf32>
    %267 = tpu.matmul %266, %11, %cst_45 {dimension_numbers = #tpu.dot_dimension_numbers<[1], [0], [0], [1], [0, 0, 1, 1], [], []>} : vector<1x16xbf16>, vector<16x64xbf16>, vector<1x64xf32> -> vector<1x64xf32>
    %268 = arith.addf %265, %267 : vector<1x64xf32>
    %269 = vector.extract_strided_slice %268 {offsets = [0, 0], sizes = [1, 48], strides = [1, 1]} : vector<1x64xf32> to vector<1x48xf32>
    %270 = arith.negf %269 : vector<1x48xf32>
    %271 = math.exp %270 : vector<1x48xf32>
    %cst_46 = arith.constant 1.000000e+00 : f32
    %272 = vector.broadcast %cst_46 : f32 to vector<1x48xf32>
    %273 = arith.addf %272, %271 : vector<1x48xf32>
    %274 = arith.divf %272, %273 : vector<1x48xf32>
    %275 = vector.extract_strided_slice %274 {offsets = [0, 0], sizes = [1, 16], strides = [1, 1]} : vector<1x48xf32> to vector<1x16xf32>
    %276 = vector.extract_strided_slice %274 {offsets = [0, 16], sizes = [1, 16], strides = [1, 1]} : vector<1x48xf32> to vector<1x16xf32>
    %277 = vector.extract_strided_slice %274 {offsets = [0, 32], sizes = [1, 16], strides = [1, 1]} : vector<1x48xf32> to vector<1x16xf32>
    %278 = vector.extract_strided_slice %268 {offsets = [0, 48], sizes = [1, 16], strides = [1, 1]} : vector<1x64xf32> to vector<1x16xf32>
    %279 = math.tanh %278 : vector<1x16xf32>
    %280 = arith.mulf %276, %260 : vector<1x16xf32>
    %281 = arith.mulf %275, %279 : vector<1x16xf32>
    %282 = arith.addf %280, %281 : vector<1x16xf32>
    %283 = math.tanh %282 : vector<1x16xf32>
    %284 = arith.mulf %277, %283 : vector<1x16xf32>
    %285 = arith.addf %263, %284 : vector<1x16xf32>
    %286 = vector.extract_strided_slice %7 {offsets = [0, 3, 64], sizes = [1, 1, 64], strides = [1, 1, 1]} : vector<1x8x128xf32> to vector<1x1x64xf32>
    %287 = vector.shape_cast %286 : vector<1x1x64xf32> to vector<1x64xf32>
    %288 = arith.truncf %284 : vector<1x16xf32> to vector<1x16xbf16>
    %cst_47 = arith.constant dense<0.000000e+00> : vector<1x64xf32>
    %289 = tpu.matmul %288, %11, %cst_47 {dimension_numbers = #tpu.dot_dimension_numbers<[1], [0], [0], [1], [0, 0, 1, 1], [], []>} : vector<1x16xbf16>, vector<16x64xbf16>, vector<1x64xf32> -> vector<1x64xf32>
    %290 = arith.addf %287, %289 : vector<1x64xf32>
    %291 = vector.extract_strided_slice %290 {offsets = [0, 0], sizes = [1, 48], strides = [1, 1]} : vector<1x64xf32> to vector<1x48xf32>
    %292 = arith.negf %291 : vector<1x48xf32>
    %293 = math.exp %292 : vector<1x48xf32>
    %cst_48 = arith.constant 1.000000e+00 : f32
    %294 = vector.broadcast %cst_48 : f32 to vector<1x48xf32>
    %295 = arith.addf %294, %293 : vector<1x48xf32>
    %296 = arith.divf %294, %295 : vector<1x48xf32>
    %297 = vector.extract_strided_slice %296 {offsets = [0, 0], sizes = [1, 16], strides = [1, 1]} : vector<1x48xf32> to vector<1x16xf32>
    %298 = vector.extract_strided_slice %296 {offsets = [0, 16], sizes = [1, 16], strides = [1, 1]} : vector<1x48xf32> to vector<1x16xf32>
    %299 = vector.extract_strided_slice %296 {offsets = [0, 32], sizes = [1, 16], strides = [1, 1]} : vector<1x48xf32> to vector<1x16xf32>
    %300 = vector.extract_strided_slice %290 {offsets = [0, 48], sizes = [1, 16], strides = [1, 1]} : vector<1x64xf32> to vector<1x16xf32>
    %301 = math.tanh %300 : vector<1x16xf32>
    %302 = arith.mulf %298, %282 : vector<1x16xf32>
    %303 = arith.mulf %297, %301 : vector<1x16xf32>
    %304 = arith.addf %302, %303 : vector<1x16xf32>
    %305 = math.tanh %304 : vector<1x16xf32>
    %306 = arith.mulf %299, %305 : vector<1x16xf32>
    %307 = arith.addf %285, %306 : vector<1x16xf32>
    %308 = vector.extract_strided_slice %7 {offsets = [0, 2, 64], sizes = [1, 1, 64], strides = [1, 1, 1]} : vector<1x8x128xf32> to vector<1x1x64xf32>
    %309 = vector.shape_cast %308 : vector<1x1x64xf32> to vector<1x64xf32>
    %310 = arith.truncf %306 : vector<1x16xf32> to vector<1x16xbf16>
    %cst_49 = arith.constant dense<0.000000e+00> : vector<1x64xf32>
    %311 = tpu.matmul %310, %11, %cst_49 {dimension_numbers = #tpu.dot_dimension_numbers<[1], [0], [0], [1], [0, 0, 1, 1], [], []>} : vector<1x16xbf16>, vector<16x64xbf16>, vector<1x64xf32> -> vector<1x64xf32>
    %312 = arith.addf %309, %311 : vector<1x64xf32>
    %313 = vector.extract_strided_slice %312 {offsets = [0, 0], sizes = [1, 48], strides = [1, 1]} : vector<1x64xf32> to vector<1x48xf32>
    %314 = arith.negf %313 : vector<1x48xf32>
    %315 = math.exp %314 : vector<1x48xf32>
    %cst_50 = arith.constant 1.000000e+00 : f32
    %316 = vector.broadcast %cst_50 : f32 to vector<1x48xf32>
    %317 = arith.addf %316, %315 : vector<1x48xf32>
    %318 = arith.divf %316, %317 : vector<1x48xf32>
    %319 = vector.extract_strided_slice %318 {offsets = [0, 0], sizes = [1, 16], strides = [1, 1]} : vector<1x48xf32> to vector<1x16xf32>
    %320 = vector.extract_strided_slice %318 {offsets = [0, 16], sizes = [1, 16], strides = [1, 1]} : vector<1x48xf32> to vector<1x16xf32>
    %321 = vector.extract_strided_slice %318 {offsets = [0, 32], sizes = [1, 16], strides = [1, 1]} : vector<1x48xf32> to vector<1x16xf32>
    %322 = vector.extract_strided_slice %312 {offsets = [0, 48], sizes = [1, 16], strides = [1, 1]} : vector<1x64xf32> to vector<1x16xf32>
    %323 = math.tanh %322 : vector<1x16xf32>
    %324 = arith.mulf %320, %304 : vector<1x16xf32>
    %325 = arith.mulf %319, %323 : vector<1x16xf32>
    %326 = arith.addf %324, %325 : vector<1x16xf32>
    %327 = math.tanh %326 : vector<1x16xf32>
    %328 = arith.mulf %321, %327 : vector<1x16xf32>
    %329 = arith.addf %307, %328 : vector<1x16xf32>
    %330 = vector.extract_strided_slice %7 {offsets = [0, 1, 64], sizes = [1, 1, 64], strides = [1, 1, 1]} : vector<1x8x128xf32> to vector<1x1x64xf32>
    %331 = vector.shape_cast %330 : vector<1x1x64xf32> to vector<1x64xf32>
    %332 = arith.truncf %328 : vector<1x16xf32> to vector<1x16xbf16>
    %cst_51 = arith.constant dense<0.000000e+00> : vector<1x64xf32>
    %333 = tpu.matmul %332, %11, %cst_51 {dimension_numbers = #tpu.dot_dimension_numbers<[1], [0], [0], [1], [0, 0, 1, 1], [], []>} : vector<1x16xbf16>, vector<16x64xbf16>, vector<1x64xf32> -> vector<1x64xf32>
    %334 = arith.addf %331, %333 : vector<1x64xf32>
    %335 = vector.extract_strided_slice %334 {offsets = [0, 0], sizes = [1, 48], strides = [1, 1]} : vector<1x64xf32> to vector<1x48xf32>
    %336 = arith.negf %335 : vector<1x48xf32>
    %337 = math.exp %336 : vector<1x48xf32>
    %cst_52 = arith.constant 1.000000e+00 : f32
    %338 = vector.broadcast %cst_52 : f32 to vector<1x48xf32>
    %339 = arith.addf %338, %337 : vector<1x48xf32>
    %340 = arith.divf %338, %339 : vector<1x48xf32>
    %341 = vector.extract_strided_slice %340 {offsets = [0, 0], sizes = [1, 16], strides = [1, 1]} : vector<1x48xf32> to vector<1x16xf32>
    %342 = vector.extract_strided_slice %340 {offsets = [0, 16], sizes = [1, 16], strides = [1, 1]} : vector<1x48xf32> to vector<1x16xf32>
    %343 = vector.extract_strided_slice %340 {offsets = [0, 32], sizes = [1, 16], strides = [1, 1]} : vector<1x48xf32> to vector<1x16xf32>
    %344 = vector.extract_strided_slice %334 {offsets = [0, 48], sizes = [1, 16], strides = [1, 1]} : vector<1x64xf32> to vector<1x16xf32>
    %345 = math.tanh %344 : vector<1x16xf32>
    %346 = arith.mulf %342, %326 : vector<1x16xf32>
    %347 = arith.mulf %341, %345 : vector<1x16xf32>
    %348 = arith.addf %346, %347 : vector<1x16xf32>
    %349 = math.tanh %348 : vector<1x16xf32>
    %350 = arith.mulf %343, %349 : vector<1x16xf32>
    %351 = arith.addf %329, %350 : vector<1x16xf32>
    %352 = vector.extract_strided_slice %7 {offsets = [0, 0, 64], sizes = [1, 1, 64], strides = [1, 1, 1]} : vector<1x8x128xf32> to vector<1x1x64xf32>
    %353 = vector.shape_cast %352 : vector<1x1x64xf32> to vector<1x64xf32>
    %354 = arith.truncf %350 : vector<1x16xf32> to vector<1x16xbf16>
    %cst_53 = arith.constant dense<0.000000e+00> : vector<1x64xf32>
    %355 = tpu.matmul %354, %11, %cst_53 {dimension_numbers = #tpu.dot_dimension_numbers<[1], [0], [0], [1], [0, 0, 1, 1], [], []>} : vector<1x16xbf16>, vector<16x64xbf16>, vector<1x64xf32> -> vector<1x64xf32>
    %356 = arith.addf %353, %355 : vector<1x64xf32>
    %357 = vector.extract_strided_slice %356 {offsets = [0, 0], sizes = [1, 48], strides = [1, 1]} : vector<1x64xf32> to vector<1x48xf32>
    %358 = arith.negf %357 : vector<1x48xf32>
    %359 = math.exp %358 : vector<1x48xf32>
    %cst_54 = arith.constant 1.000000e+00 : f32
    %360 = vector.broadcast %cst_54 : f32 to vector<1x48xf32>
    %361 = arith.addf %360, %359 : vector<1x48xf32>
    %362 = arith.divf %360, %361 : vector<1x48xf32>
    %363 = vector.extract_strided_slice %362 {offsets = [0, 0], sizes = [1, 16], strides = [1, 1]} : vector<1x48xf32> to vector<1x16xf32>
    %364 = vector.extract_strided_slice %362 {offsets = [0, 16], sizes = [1, 16], strides = [1, 1]} : vector<1x48xf32> to vector<1x16xf32>
    %365 = vector.extract_strided_slice %362 {offsets = [0, 32], sizes = [1, 16], strides = [1, 1]} : vector<1x48xf32> to vector<1x16xf32>
    %366 = vector.extract_strided_slice %356 {offsets = [0, 48], sizes = [1, 16], strides = [1, 1]} : vector<1x64xf32> to vector<1x16xf32>
    %367 = math.tanh %366 : vector<1x16xf32>
    %368 = arith.mulf %364, %348 : vector<1x16xf32>
    %369 = arith.mulf %363, %367 : vector<1x16xf32>
    %370 = arith.addf %368, %369 : vector<1x16xf32>
    %371 = math.tanh %370 : vector<1x16xf32>
    %372 = arith.mulf %365, %371 : vector<1x16xf32>
    %373 = arith.addf %351, %372 : vector<1x16xf32>
    %374 = tpu.concatenate %192, %373 in 1 : vector<1x16xf32>, vector<1x16xf32> -> vector<1x32xf32>
    %375 = arith.truncf %374 : vector<1x32xf32> to vector<1x32xbf16>
    %c0_55 = arith.constant 0 : index
    %c0_56 = arith.constant 0 : index
    %376 = vector.load %arg6[%c0_55, %c0_56] : memref<32x128xbf16, #tpu.memory_space<vmem>>, vector<32x128xbf16>
    %cst_57 = arith.constant dense<0.000000e+00> : vector<1x128xf32>
    %377 = tpu.matmul %375, %376, %cst_57 {dimension_numbers = #tpu.dot_dimension_numbers<[1], [0], [0], [1], [0, 0, 1, 1], [], []>} : vector<1x32xbf16>, vector<32x128xbf16>, vector<1x128xf32> -> vector<1x128xf32>
    %c0_58 = arith.constant 0 : index
    %c0_59 = arith.constant 0 : index
    %378 = vector.load %arg7[%c0_58, %c0_59] : memref<1x128xf32, #tpu.memory_space<vmem>>, vector<1x128xf32>
    %379 = arith.addf %377, %378 : vector<1x128xf32>
    %cst_60 = arith.constant 0.000000e+00 : f32
    %380 = vector.broadcast %cst_60 : f32 to vector<1x128xf32>
    %381 = arith.maximumf %379, %380 : vector<1x128xf32>
    %382 = arith.truncf %381 : vector<1x128xf32> to vector<1x128xbf16>
    %c0_61 = arith.constant 0 : index
    %c0_62 = arith.constant 0 : index
    %383 = vector.load %arg8[%c0_61, %c0_62] : memref<128x128xbf16, #tpu.memory_space<vmem>>, vector<128x128xbf16>
    %cst_63 = arith.constant dense<0.000000e+00> : vector<1x128xf32>
    %384 = tpu.matmul %382, %383, %cst_63 {dimension_numbers = #tpu.dot_dimension_numbers<[1], [0], [0], [1], [0, 0, 1, 1], [], []>} : vector<1x128xbf16>, vector<128x128xbf16>, vector<1x128xf32> -> vector<1x128xf32>
    %c0_64 = arith.constant 0 : index
    %c0_65 = arith.constant 0 : index
    %385 = vector.load %arg9[%c0_64, %c0_65] : memref<1x128xf32, #tpu.memory_space<vmem>>, vector<1x128xf32>
    %386 = arith.addf %384, %385 : vector<1x128xf32>
    %cst_66 = arith.constant dense<0xFF800000> : vector<1xf32>
    %387 = vector.multi_reduction <maximumf>, %386, %cst_66 [1] : vector<1x128xf32> to vector<1xf32>
    %cst_67 = arith.constant 0xFF800000 : f32
    %388 = vector.broadcast %cst_67 : f32 to vector<1xf32>
    %389 = arith.maximumf %388, %387 : vector<1xf32>
    %390 = vector.shape_cast %389 : vector<1xf32> to vector<1x1xf32>
    %391 = vector.broadcast %390 : vector<1x1xf32> to vector<1x128xf32>
    %392 = arith.subf %386, %391 : vector<1x128xf32>
    %393 = math.exp %392 : vector<1x128xf32>
    %cst_68 = arith.constant dense<0.000000e+00> : vector<1xf32>
    %394 = vector.multi_reduction <add>, %393, %cst_68 [1] : vector<1x128xf32> to vector<1xf32>
    %395 = vector.shape_cast %394 : vector<1xf32> to vector<1x1xf32>
    %396 = vector.broadcast %395 : vector<1x1xf32> to vector<1x128xf32>
    %397 = arith.divf %393, %396 : vector<1x128xf32>
    %398 = vector.shape_cast %397 : vector<1x128xf32> to vector<1x1x128xf32>
    %c0_69 = arith.constant 0 : index
    %c0_70 = arith.constant 0 : index
    %c0_71 = arith.constant 0 : index
    %399 = vector.load %arg10[%c0_69, %c0_70, %c0_71] : memref<1x1x128xf32, #tpu.memory_space<vmem>>, vector<1x1x128xf32>
    tpu.vector_store %arg10[%c0_69, %c0_70, %c0_71], %398 {strides = array<i32>} : memref<1x1x128xf32, #tpu.memory_space<vmem>>, vector<1x1x128xf32>,
    return
  }
  func.func @transform_0(%arg0: i32) -> (i32, i32, i32) {
    %c0_i32 = arith.constant 0 : i32
    %c0_i32_0 = arith.constant 0 : i32
    %c0_i32_1 = arith.constant 0 : i32
    return %arg0, %c0_i32, %c0_i32_0 : i32, i32, i32
  }
  func.func @transform_1(%arg0: i32) -> (i32, i32, i32) {
    %c0_i32 = arith.constant 0 : i32
    %c0_i32_0 = arith.constant 0 : i32
    %c0_i32_1 = arith.constant 0 : i32
    return %arg0, %c0_i32, %c0_i32_0 : i32, i32, i32
  }
  func.func @transform_2(%arg0: i32) -> (i32, i32) {
    %c0_i32 = arith.constant 0 : i32
    %c0_i32_0 = arith.constant 0 : i32
    %c0_i32_1 = arith.constant 0 : i32
    return %c0_i32, %c0_i32_0 : i32, i32
  }
  func.func @transform_3(%arg0: i32) -> (i32, i32) {
    %c0_i32 = arith.constant 0 : i32
    %c0_i32_0 = arith.constant 0 : i32
    %c0_i32_1 = arith.constant 0 : i32
    return %c0_i32, %c0_i32_0 : i32, i32
  }
  func.func @transform_4(%arg0: i32) -> (i32, i32, i32) {
    %c0_i32 = arith.constant 0 : i32
    %c0_i32_0 = arith.constant 0 : i32
    %c0_i32_1 = arith.constant 0 : i32
    %c0_i32_2 = arith.constant 0 : i32
    return %c0_i32, %c0_i32_0, %c0_i32_1 : i32, i32, i32
  }
  func.func @transform_5(%arg0: i32) -> (i32, i32) {
    %c0_i32 = arith.constant 0 : i32
    %c0_i32_0 = arith.constant 0 : i32
    %c0_i32_1 = arith.constant 0 : i32
    return %c0_i32, %c0_i32_0 : i32, i32
  }
  func.func @transform_6(%arg0: i32) -> (i32, i32) {
    %c0_i32 = arith.constant 0 : i32
    %c0_i32_0 = arith.constant 0 : i32
    %c0_i32_1 = arith.constant 0 : i32
    return %c0_i32, %c0_i32_0 : i32, i32
  }
  func.func @transform_7(%arg0: i32) -> (i32, i32) {
    %c0_i32 = arith.constant 0 : i32
    %c0_i32_0 = arith.constant 0 : i32
    %c0_i32_1 = arith.constant 0 : i32
    return %c0_i32, %c0_i32_0 : i32, i32
  }
  func.func @transform_8(%arg0: i32) -> (i32, i32) {
    %c0_i32 = arith.constant 0 : i32
    %c0_i32_0 = arith.constant 0 : i32
    %c0_i32_1 = arith.constant 0 : i32
    return %c0_i32, %c0_i32_0 : i32, i32
  }
  func.func @transform_9(%arg0: i32) -> (i32, i32, i32) {
    %c0_i32 = arith.constant 0 : i32
    %c0_i32_0 = arith.constant 0 : i32
    %c0_i32_1 = arith.constant 0 : i32
    return %arg0, %c0_i32, %c0_i32_0 : i32, i32, i32
  }
}

</mosaic_0001>

<llo_original>
// kernel: tpu_custom_call.1
$region0: #{tpu_custom_call.1}
  #allocation0 [shape = 'u32[]', space=smem, size = 0x4, offset = 0x4, fixed_abs, tag = 'smem constant byte address 0x4 - core index']
  #allocation1 [shape = 'u32[144,128]{1,0:T(1,128)}', space=vmem, size = 0x12000, scoped, tag = 'internal scratch']
  %s0 = inlined_call_operand.hbm [shape: bf16[2,8,32], index: 0, kind: input, shape index: {}]
  %s1 = inlined_call_operand.hbm [shape: f32[2,4,16], index: 1, kind: input, shape index: {}]
  %s2 = inlined_call_operand.hbm [shape: bf16[32,128], index: 2, kind: input, shape index: {}]
  %s3 = inlined_call_operand.vmem [shape: f32[1,128], index: 3, kind: input, shape index: {}]
  %s4 = inlined_call_operand.hbm [shape: bf16[2,16,64], index: 4, kind: input, shape index: {}]
  %s5 = inlined_call_operand.hbm [shape: bf16[32,128], index: 5, kind: input, shape index: {}]
  %s6 = inlined_call_operand.vmem [shape: f32[1,128], index: 6, kind: input, shape index: {}]
  %s7 = inlined_call_operand.hbm [shape: bf16[128,128], index: 7, kind: input, shape index: {}]
  %s8 = inlined_call_operand.vmem [shape: f32[1,128], index: 8, kind: input, shape index: {}]
  %s9 = inlined_call_operand.hbm [shape: f32[2,1,128], index: 9, kind: output, shape index: {}]
  %s10 = sld [smem:[#allocation0]]
  $region93: #{tpu_custom_call.1} parent=0
    _
  %s12 = ssub.s32 1, %s10
  %s13 = scalar_select 0, %s12, %s10
  $region1: #{tpu_custom_call.1} parent=0
    #allocation2 [shape = 'u8[4096]{0}', space=vmem, size = 0x1000, scoped, tag = 'input window, operand 0']
    #allocation3 [shape = 's32[2]{0}', space=sflag, size = 0x8, scoped, tag = 'scoped memory for tpu_custom_call.1']
    #allocation4 [shape = 's32[2]{0}', space=sflag, size = 0x8, scoped, tag = 'scoped memory for tpu_custom_call.1']
    #allocation5 [shape = 'u8[4096]{0}', space=vmem, size = 0x1000, scoped, tag = 'input window, operand 1']
    #allocation6 [shape = 's32[2]{0}', space=sflag, size = 0x8, scoped, tag = 'scoped memory for tpu_custom_call.1']
    #allocation7 [shape = 'u8[8192]{0}', space=vmem, size = 0x2000, scoped, tag = 'input window, operand 2, single buffered']
    #allocation8 [shape = 'u8[8192]{0}', space=vmem, size = 0x2000, scoped, tag = 'input window, operand 4, single buffered']
    #allocation9 [shape = 's32[1]{0}', space=sflag, size = 0x4, scoped, tag = 'scoped memory for tpu_custom_call.1']
    #allocation10 [shape = 'u8[8192]{0}', space=vmem, size = 0x2000, scoped, tag = 'input window, operand 5, single buffered']
    #allocation11 [shape = 'u8[32768]{0}', space=vmem, size = 0x8000, scoped, tag = 'input window, operand 7, single buffered']
    #allocation12 [shape = 's32[1]{0}', space=sflag, size = 0x4, scoped, tag = 'scoped memory for tpu_custom_call.1']
    #allocation13 [shape = 'u8[1024]{0}', space=vmem, size = 0x400, scoped, tag = 'output window, operand 0']
    %14 = vsyncpa [#allocation3], 0
    %s15 = scalar_lea.sflag [#allocation3], 1
    %16 = vsyncpa %s15, 0
    %17 = vsyncpa [#allocation6], 0
    %s18 = scalar_lea.sflag [#allocation6], 1
    %19 = vsyncpa %s18, 0
    %20 = vsyncpa [#allocation9], 0
    %21 = vsyncpa [#allocation12], 0
    %22 = vsyncpa [#allocation4], 0
    %s23 = scalar_lea.sflag [#allocation4], 1
    %24 = vsyncpa %s23, 0
    loop: start=0, step=1, limit=4
    $region2: #{tpu_custom_call.1} parent=1 // loop_pre_header
      _
    $region3: #{tpu_custom_call.1} parent=1 // loop_header
      %s26 = sphi 0, %s30
      %p27 = scmp.ge.s32.totalorder %s26, 4
      %s36 = sphi 0, %s38
      %s39 = sphi 0, %s36
      %s40 = sphi 0, %s39
      %s56 = sphi 0, %s40
      %s62 = sphi 0, %s64
      %s65 = sphi 0, %s62
      %s66 = sphi 0, %s65
      %s82 = sphi 0, %s66
      %s86 = sphi 0, %s86
      %s88 = sphi 0, %s86
      %s89 = sphi 0, %s88
      %s103 = sphi 0, %s89
      %s107 = sphi 0, %s107
      %s109 = sphi 0, %s107
      %s110 = sphi 0, %s109
      %s124 = sphi 0, %s110
      %s128 = sphi 0, %s128
      %s130 = sphi 0, %s128
      %s131 = sphi 0, %s130
      %s145 = sphi 0, %s131
      %s149 = sphi 0, %s149
      %s151 = sphi 0, %s149
      %s152 = sphi 0, %s151
      %s166 = sphi 0, %s152
      %s170 = sphi 0, %s170
      %s172 = sphi 0, %s170
      %s173 = sphi 0, %s172
      %s187 = sphi 0, %s173
      %s191 = sphi 0, %s191
      %s193 = sphi 0, %s191
      %s194 = sphi 0, %s193
      %s208 = sphi 0, %s194
      %s212 = sphi 0, %s212
      %s214 = sphi 0, %s212
      %s215 = sphi 0, %s214
      %s229 = sphi 0, %s215
      %s235 = sphi 0, %s237
      %s238 = sphi 0, %s235
      %s239 = sphi 0, %s238
      %s255 = sphi 0, %s239
    $region4: #{tpu_custom_call.1} parent=1 // loop_header_branch
      %29 = sbr.rel (%p27) target = $region8
    $region5: #{tpu_custom_call.1} parent=1 // loop_body
      %s31 = ssub.s32 %s26, 1
      %s32 = ssub.s32 %s26, 2
      %s33 = sadd.s32 %s26, 1
      %s34 = ssub.s32 %s26, %s33
      %p35 = scmp.eq.s32.totalorder %s34, 0
      %s37 = sadd.s32 %s36, 1
      %s38 = scalar_select %p35, %s36, %s37
      %p41 = pneg %p35
      %p42 = scmp.eq.s32.totalorder %s26, 1
      %p43 = por %p41, %p42
      %p44 = scmp.ne.s32.totalorder %s36, %s39
      %p45 = scmp.eq.s32.totalorder %s26, 0
      %p46 = por %p44, %p45
      %p47 = scmp.ne.s32.totalorder %s36, %s39
      %p48 = scmp.eq.s32.totalorder %s31, 1
      %p49 = por %p47, %p48
      %p50 = scmp.ne.s32.totalorder %s39, %s40
      %p51 = scmp.eq.s32.totalorder %s31, 0
      %p52 = por %p50, %p51
      %p53 = scmp.ne.s32.totalorder %s39, %s40
      %p54 = scmp.eq.s32.totalorder %s32, 1
      %p55 = por %p53, %p54
      %p57 = scmp.ne.s32.totalorder %s40, %s56
      %p58 = scmp.eq.s32.totalorder %s32, 0
      %p59 = por %p57, %p58
      %s60 = ssub.s32 %s26, %s33
      %p61 = scmp.eq.s32.totalorder %s60, 0
      %s63 = sadd.s32 %s62, 1
      %s64 = scalar_select %p61, %s62, %s63
      %p67 = pneg %p61
      %p68 = scmp.eq.s32.totalorder %s26, 1
      %p69 = por %p67, %p68
      %p70 = scmp.ne.s32.totalorder %s62, %s65
      %p71 = scmp.eq.s32.totalorder %s26, 0
      %p72 = por %p70, %p71
      %p73 = scmp.ne.s32.totalorder %s62, %s65
      %p74 = scmp.eq.s32.totalorder %s31, 1
      %p75 = por %p73, %p74
      %p76 = scmp.ne.s32.totalorder %s65, %s66
      %p77 = scmp.eq.s32.totalorder %s31, 0
      %p78 = por %p76, %p77
      %p79 = scmp.ne.s32.totalorder %s65, %s66
      %p80 = scmp.eq.s32.totalorder %s32, 1
      %p81 = por %p79, %p80
      %p83 = scmp.ne.s32.totalorder %s66, %s82
      %p84 = scmp.eq.s32.totalorder %s32, 0
      %p85 = por %p83, %p84
      %s87 = sadd.s32 %s86, 1
      %p90 = scmp.eq.s32.totalorder %s26, 1
      %p91 = scmp.ne.s32.totalorder %s86, %s88
      %p92 = scmp.eq.s32.totalorder %s26, 0
      %p93 = por %p91, %p92
      %p94 = scmp.ne.s32.totalorder %s86, %s88
      %p95 = scmp.eq.s32.totalorder %s31, 1
      %p96 = por %p94, %p95
      %p97 = scmp.ne.s32.totalorder %s88, %s89
      %p98 = scmp.eq.s32.totalorder %s31, 0
      %p99 = por %p97, %p98
      %p100 = scmp.ne.s32.totalorder %s88, %s89
      %p101 = scmp.eq.s32.totalorder %s32, 1
      %p102 = por %p100, %p101
      %p104 = scmp.ne.s32.totalorder %s89, %s103
      %p105 = scmp.eq.s32.totalorder %s32, 0
      %p106 = por %p104, %p105
      %s108 = sadd.s32 %s107, 1
      %p111 = scmp.eq.s32.totalorder %s26, 1
      %p112 = scmp.ne.s32.totalorder %s107, %s109
      %p113 = scmp.eq.s32.totalorder %s26, 0
      %p114 = por %p112, %p113
      %p115 = scmp.ne.s32.totalorder %s107, %s109
      %p116 = scmp.eq.s32.totalorder %s31, 1
      %p117 = por %p115, %p116
      %p118 = scmp.ne.s32.totalorder %s109, %s110
      %p119 = scmp.eq.s32.totalorder %s31, 0
      %p120 = por %p118, %p119
      %p121 = scmp.ne.s32.totalorder %s109, %s110
      %p122 = scmp.eq.s32.totalorder %s32, 1
      %p123 = por %p121, %p122
      %p125 = scmp.ne.s32.totalorder %s110, %s124
      %p126 = scmp.eq.s32.totalorder %s32, 0
      %p127 = por %p125, %p126
      %s129 = sadd.s32 %s128, 1
      %p132 = scmp.eq.s32.totalorder %s26, 1
      %p133 = scmp.ne.s32.totalorder %s128, %s130
      %p134 = scmp.eq.s32.totalorder %s26, 0
      %p135 = por %p133, %p134
      %p136 = scmp.ne.s32.totalorder %s128, %s130
      %p137 = scmp.eq.s32.totalorder %s31, 1
      %p138 = por %p136, %p137
      %p139 = scmp.ne.s32.totalorder %s130, %s131
      %p140 = scmp.eq.s32.totalorder %s31, 0
      %p141 = por %p139, %p140
      %p142 = scmp.ne.s32.totalorder %s130, %s131
      %p143 = scmp.eq.s32.totalorder %s32, 1
      %p144 = por %p142, %p143
      %p146 = scmp.ne.s32.totalorder %s131, %s145
      %p147 = scmp.eq.s32.totalorder %s32, 0
      %p148 = por %p146, %p147
      %s150 = sadd.s32 %s149, 1
      %p153 = scmp.eq.s32.totalorder %s26, 1
      %p154 = scmp.ne.s32.totalorder %s149, %s151
      %p155 = scmp.eq.s32.totalorder %s26, 0
      %p156 = por %p154, %p155
      %p157 = scmp.ne.s32.totalorder %s149, %s151
      %p158 = scmp.eq.s32.totalorder %s31, 1
      %p159 = por %p157, %p158
      %p160 = scmp.ne.s32.totalorder %s151, %s152
      %p161 = scmp.eq.s32.totalorder %s31, 0
      %p162 = por %p160, %p161
      %p163 = scmp.ne.s32.totalorder %s151, %s152
      %p164 = scmp.eq.s32.totalorder %s32, 1
      %p165 = por %p163, %p164
      %p167 = scmp.ne.s32.totalorder %s152, %s166
      %p168 = scmp.eq.s32.totalorder %s32, 0
      %p169 = por %p167, %p168
      %s171 = sadd.s32 %s170, 1
      %p174 = scmp.eq.s32.totalorder %s26, 1
      %p175 = scmp.ne.s32.totalorder %s170, %s172
      %p176 = scmp.eq.s32.totalorder %s26, 0
      %p177 = por %p175, %p176
      %p178 = scmp.ne.s32.totalorder %s170, %s172
      %p179 = scmp.eq.s32.totalorder %s31, 1
      %p180 = por %p178, %p179
      %p181 = scmp.ne.s32.totalorder %s172, %s173
      %p182 = scmp.eq.s32.totalorder %s31, 0
      %p183 = por %p181, %p182
      %p184 = scmp.ne.s32.totalorder %s172, %s173
      %p185 = scmp.eq.s32.totalorder %s32, 1
      %p186 = por %p184, %p185
      %p188 = scmp.ne.s32.totalorder %s173, %s187
      %p189 = scmp.eq.s32.totalorder %s32, 0
      %p190 = por %p188, %p189
      %s192 = sadd.s32 %s191, 1
      %p195 = scmp.eq.s32.totalorder %s26, 1
      %p196 = scmp.ne.s32.totalorder %s191, %s193
      %p197 = scmp.eq.s32.totalorder %s26, 0
      %p198 = por %p196, %p197
      %p199 = scmp.ne.s32.totalorder %s191, %s193
      %p200 = scmp.eq.s32.totalorder %s31, 1
      %p201 = por %p199, %p200
      %p202 = scmp.ne.s32.totalorder %s193, %s194
      %p203 = scmp.eq.s32.totalorder %s31, 0
      %p204 = por %p202, %p203
      %p205 = scmp.ne.s32.totalorder %s193, %s194
      %p206 = scmp.eq.s32.totalorder %s32, 1
      %p207 = por %p205, %p206
      %p209 = scmp.ne.s32.totalorder %s194, %s208
      %p210 = scmp.eq.s32.totalorder %s32, 0
      %p211 = por %p209, %p210
      %s213 = sadd.s32 %s212, 1
      %p216 = scmp.eq.s32.totalorder %s26, 1
      %p217 = scmp.ne.s32.totalorder %s212, %s214
      %p218 = scmp.eq.s32.totalorder %s26, 0
      %p219 = por %p217, %p218
      %p220 = scmp.ne.s32.totalorder %s212, %s214
      %p221 = scmp.eq.s32.totalorder %s31, 1
      %p222 = por %p220, %p221
      %p223 = scmp.ne.s32.totalorder %s214, %s215
      %p224 = scmp.eq.s32.totalorder %s31, 0
      %p225 = por %p223, %p224
      %p226 = scmp.ne.s32.totalorder %s214, %s215
      %p227 = scmp.eq.s32.totalorder %s32, 1
      %p228 = por %p226, %p227
      %p230 = scmp.ne.s32.totalorder %s215, %s229
      %p231 = scmp.eq.s32.totalorder %s32, 0
      %p232 = por %p230, %p231
      %s233 = ssub.s32 %s26, %s33
      %p234 = scmp.eq.s32.totalorder %s233, 0
      %s236 = sadd.s32 %s235, 1
      %s237 = scalar_select %p234, %s235, %s236
      %p240 = pneg %p234
      %p241 = scmp.eq.s32.totalorder %s26, 1
      %p242 = por %p240, %p241
      %p243 = scmp.ne.s32.totalorder %s235, %s238
      %p244 = scmp.eq.s32.totalorder %s26, 0
      %p245 = por %p243, %p244
      %p246 = scmp.ne.s32.totalorder %s235, %s238
      %p247 = scmp.eq.s32.totalorder %s31, 1
      %p248 = por %p246, %p247
      %p249 = scmp.ne.s32.totalorder %s238, %s239
      %p250 = scmp.eq.s32.totalorder %s31, 0
      %p251 = por %p249, %p250
      %p252 = scmp.ne.s32.totalorder %s238, %s239
      %p253 = scmp.eq.s32.totalorder %s32, 1
      %p254 = por %p252, %p253
      %p256 = scmp.ne.s32.totalorder %s239, %s255
      %p257 = scmp.eq.s32.totalorder %s32, 0
      %p258 = por %p256, %p257
      %p259 = scmp.le.s32.totalorder 1, %s26
      %p260 = scmp.lt.s32.totalorder %s26, 3
      %p261 = pnand %p259, %p260
      %p262 = pneg %p261
      // Predicated region
      $region9: #{tpu_custom_call.1} parent=5 // pred_check
        _
      $region10: #{tpu_custom_call.1} parent=5 // pred_check_branch
        %264 = sbr.rel (%p261) target = $region12
      $region11: #{tpu_custom_call.1} parent=5 // pred_region
        %s265 = ssub.s32 %s26, 1
        // Predicated region
        $region13: #{tpu_custom_call.1} parent=11 // pred_check
          %p266 = pneg %p99
        $region14: #{tpu_custom_call.1} parent=11 // pred_check_branch
          %268 = sbr.rel (%p266) target = $region16
        $region15: #{tpu_custom_call.1} parent=11 // pred_region
          %s270 = ssub.s32 256, 256
          %271 = vsyncadd [#allocation6], %s270
          %s272 = sshll.u32 [#allocation7], 4
          %s273 = int_to_ptr.vmem [resolvable:$true] %s272
          %278 = dma.hbm_to_vmem [thread:$0]  %s2, 256, %s273, [#allocation6], 64, 64, 4
        $region16: #{tpu_custom_call.1} parent=11 // pred_fallthru
          _
        // Predicated region
        $region17: #{tpu_custom_call.1} parent=11 // pred_check
          %p279 = pneg %p120
        $region18: #{tpu_custom_call.1} parent=11 // pred_check_branch
          %281 = sbr.rel (%p279) target = $region20
        $region19: #{tpu_custom_call.1} parent=11 // pred_region
          _
        $region20: #{tpu_custom_call.1} parent=11 // pred_fallthru
          _
        // Predicated region
        $region21: #{tpu_custom_call.1} parent=11 // pred_check
          %p282 = pneg %p141
        $region22: #{tpu_custom_call.1} parent=11 // pred_check_branch
          %284 = sbr.rel (%p282) target = $region24
        $region23: #{tpu_custom_call.1} parent=11 // pred_region
          %s286 = ssub.s32 256, 256
          %287 = vsyncadd [#allocation9], %s286
          %s288 = sshll.u32 [#allocation8], 4
          %s289 = int_to_ptr.vmem [resolvable:$true] %s288
          %294 = dma.hbm_to_vmem [thread:$0]  %s4, 256, %s289, [#allocation9], 64, 64, 4
        $region24: #{tpu_custom_call.1} parent=11 // pred_fallthru
          _
        // Predicated region
        $region25: #{tpu_custom_call.1} parent=11 // pred_check
          %p295 = pneg %p162
        $region26: #{tpu_custom_call.1} parent=11 // pred_check_branch
          %297 = sbr.rel (%p295) target = $region28
        $region27: #{tpu_custom_call.1} parent=11 // pred_region
          %s299 = ssub.s32 256, 256
          %300 = vsyncadd [#allocation9], %s299
          %s301 = sshll.u32 [#allocation10], 4
          %s302 = int_to_ptr.vmem [resolvable:$true] %s301
          %307 = dma.hbm_to_vmem [thread:$0]  %s5, 256, %s302, [#allocation9], 64, 64, 4
        $region28: #{tpu_custom_call.1} parent=11 // pred_fallthru
          _
        // Predicated region
        $region29: #{tpu_custom_call.1} parent=11 // pred_check
          %p308 = pneg %p183
        $region30: #{tpu_custom_call.1} parent=11 // pred_check_branch
          %310 = sbr.rel (%p308) target = $region32
        $region31: #{tpu_custom_call.1} parent=11 // pred_region
          _
        $region32: #{tpu_custom_call.1} parent=11 // pred_fallthru
          _
        // Predicated region
        $region33: #{tpu_custom_call.1} parent=11 // pred_check
          %p311 = pneg %p204
        $region34: #{tpu_custom_call.1} parent=11 // pred_check_branch
          %313 = sbr.rel (%p311) target = $region36
        $region35: #{tpu_custom_call.1} parent=11 // pred_region
          %s315 = ssub.s32 1024, 1024
          %316 = vsyncadd [#allocation12], %s315
          %s317 = sshll.u32 [#allocation11], 4
          %s318 = int_to_ptr.vmem [resolvable:$true] %s317
          %323 = dma.hbm_to_vmem [thread:$0]  %s7, 1024, %s318, [#allocation12], 64, 64, 4
        $region36: #{tpu_custom_call.1} parent=11 // pred_fallthru
          _
        // Predicated region
        $region37: #{tpu_custom_call.1} parent=11 // pred_check
          %p324 = pneg %p225
        $region38: #{tpu_custom_call.1} parent=11 // pred_check_branch
          %326 = sbr.rel (%p324) target = $region40
        $region39: #{tpu_custom_call.1} parent=11 // pred_region
          _
        $region40: #{tpu_custom_call.1} parent=11 // pred_fallthru
          _
      $region12: #{tpu_custom_call.1} parent=5 // pred_fallthru
        _
      %p327 = scmp.lt.s32.totalorder %s26, 2
      // Predicated region
      $region41: #{tpu_custom_call.1} parent=5 // pred_check
        %p328 = pneg %p327
      $region42: #{tpu_custom_call.1} parent=5 // pred_check_branch
        %330 = sbr.rel (%p328) target = $region44
      $region43: #{tpu_custom_call.1} parent=5 // pred_region
        // Predicated region
        $region45: #{tpu_custom_call.1} parent=43 // pred_check
          %p331 = pneg %p46
        $region46: #{tpu_custom_call.1} parent=43 // pred_check_branch
          %333 = sbr.rel (%p331) target = $region48
        $region47: #{tpu_custom_call.1} parent=43 // pred_region
          %s334 = sand.u32 %s36, 1
          %s335 = scalar_lea.sflag [#allocation3], %s334
          %s336 = sand.u32 %s36, 1
          %s337 = smul.addr %s336, 4
          %s338 = scalar_lea.vmem [#allocation2], %s337
          %s340 = ssub.s32 64, 64
          %341 = vsyncadd %s335, %s340
          %s342 = smul.addr %s26, 64
          %s343 = scalar_lea.hbm %s0, %s342
          %s345 = sshll.u32 %s338, 4
          %s346 = int_to_ptr.vmem [resolvable:$true] %s345
          %348 = dma.hbm_to_vmem [thread:$0]  %s343, 64, %s346, %s335
        $region48: #{tpu_custom_call.1} parent=43 // pred_fallthru
          _
        // Predicated region
        $region49: #{tpu_custom_call.1} parent=43 // pred_check
          %p349 = pneg %p72
        $region50: #{tpu_custom_call.1} parent=43 // pred_check_branch
          %351 = sbr.rel (%p349) target = $region52
        $region51: #{tpu_custom_call.1} parent=43 // pred_region
          %s352 = sand.u32 %s26, 1
          %s353 = scalar_lea.sflag [#allocation6], %s352
          %s354 = sand.u32 %s62, 1
          %s355 = smul.addr %s354, 4
          %s356 = scalar_lea.vmem [#allocation5], %s355
          %s358 = ssub.s32 64, 64
          %359 = vsyncadd %s353, %s358
          %s360 = smul.addr %s26, 64
          %s361 = scalar_lea.hbm %s1, %s360
          %s363 = sshll.u32 %s356, 4
          %s364 = int_to_ptr.vmem [resolvable:$true] %s363
          %366 = dma.hbm_to_vmem [thread:$0]  %s361, 64, %s364, %s353
        $region52: #{tpu_custom_call.1} parent=43 // pred_fallthru
          _
      $region44: #{tpu_custom_call.1} parent=5 // pred_fallthru
        _
      %p367 = scmp.le.s32.totalorder 1, %s26
      %p368 = scmp.lt.s32.totalorder %s26, 3
      %p369 = pnand %p367, %p368
      %p370 = pneg %p369
      // Predicated region
      $region53: #{tpu_custom_call.1} parent=5 // pred_check
        _
      $region54: #{tpu_custom_call.1} parent=5 // pred_check_branch
        %372 = sbr.rel (%p369) target = $region56
      $region55: #{tpu_custom_call.1} parent=5 // pred_region
        %s373 = ssub.s32 %s26, 1
        %s374 = sand.u32 %s39, 1
        %s375 = scalar_lea.sflag [#allocation3], %s374
        %s376 = sand.u32 %s39, 1
        %s377 = smul.addr %s376, 4
        %s378 = scalar_lea.vmem [#allocation2], %s377
        // Predicated region
        $region57: #{tpu_custom_call.1} parent=55 // pred_check
          %p379 = pneg %p52
        $region58: #{tpu_custom_call.1} parent=55 // pred_check_branch
          %381 = sbr.rel (%p379) target = $region60
        $region59: #{tpu_custom_call.1} parent=55 // pred_region
          %382 = dma.done %s375, 64
        $region60: #{tpu_custom_call.1} parent=55 // pred_fallthru
          _
        %s383 = sand.u32 %s31, 1
        %s384 = scalar_lea.sflag [#allocation6], %s383
        %s385 = sand.u32 %s65, 1
        %s386 = smul.addr %s385, 4
        %s387 = scalar_lea.vmem [#allocation5], %s386
        // Predicated region
        $region61: #{tpu_custom_call.1} parent=55 // pred_check
          %p388 = pneg %p78
        $region62: #{tpu_custom_call.1} parent=55 // pred_check_branch
          %390 = sbr.rel (%p388) target = $region64
        $region63: #{tpu_custom_call.1} parent=55 // pred_region
          %391 = dma.done %s384, 64
        $region64: #{tpu_custom_call.1} parent=55 // pred_fallthru
          _
        // Predicated region
        $region65: #{tpu_custom_call.1} parent=55 // pred_check
          %p392 = pneg %p99
        $region66: #{tpu_custom_call.1} parent=55 // pred_check_branch
          %394 = sbr.rel (%p392) target = $region68
        $region67: #{tpu_custom_call.1} parent=55 // pred_region
          %395 = dma.done [#allocation6], 256
        $region68: #{tpu_custom_call.1} parent=55 // pred_fallthru
          _
        // Predicated region
        $region69: #{tpu_custom_call.1} parent=55 // pred_check
          %p396 = pneg %p141
        $region70: #{tpu_custom_call.1} parent=55 // pred_check_branch
          %398 = sbr.rel (%p396) target = $region72
        $region71: #{tpu_custom_call.1} parent=55 // pred_region
          %399 = dma.done [#allocation9], 256
        $region72: #{tpu_custom_call.1} parent=55 // pred_fallthru
          _
        // Predicated region
        $region73: #{tpu_custom_call.1} parent=55 // pred_check
          %p400 = pneg %p162
        $region74: #{tpu_custom_call.1} parent=55 // pred_check_branch
          %402 = sbr.rel (%p400) target = $region76
        $region75: #{tpu_custom_call.1} parent=55 // pred_region
          %403 = dma.done [#allocation9], 256
        $region76: #{tpu_custom_call.1} parent=55 // pred_fallthru
          _
        // Predicated region
        $region77: #{tpu_custom_call.1} parent=55 // pred_check
          %p404 = pneg %p204
        $region78: #{tpu_custom_call.1} parent=55 // pred_check_branch
          %406 = sbr.rel (%p404) target = $region80
        $region79: #{tpu_custom_call.1} parent=55 // pred_region
          %407 = dma.done [#allocation12], 1024
        $region80: #{tpu_custom_call.1} parent=55 // pred_fallthru
          _
        %s408 = sand.u32 %s39, 1
        %s409 = scalar_lea.sflag [#allocation3], %s408
        %s410 = sand.u32 %s39, 1
        %s411 = smul.addr %s410, 4
        %s412 = scalar_lea.vmem [#allocation2], %s411
        %p413 = pneg %p52
        %p414 = pneg %p49
        %s415 = sand.u32 %s31, 1
        %s416 = scalar_lea.sflag [#allocation6], %s415
        %s417 = sand.u32 %s65, 1
        %s418 = smul.addr %s417, 4
        %s419 = scalar_lea.vmem [#allocation5], %s418
        %p420 = pneg %p78
        %p421 = pneg %p75
        %p422 = pneg %p99
        %p423 = pneg %p96
        %p424 = pneg %p120
        %p425 = pneg %p117
        %p426 = pneg %p141
        %p427 = pneg %p138
        %p428 = pneg %p162
        %p429 = pneg %p159
        %p430 = pneg %p183
        %p431 = pneg %p180
        %p432 = pneg %p204
        %p433 = pneg %p201
        %p434 = pneg %p225
        %p435 = pneg %p222
        %p436 = pneg %p251
        %p437 = pneg %p248
        %s438 = sand.u32 %s238, 1
        %s439 = scalar_lea.sflag [#allocation4], %s438
        %s440 = sand.u32 %s238, 1
        %s441 = scalar_lea.vmem [#allocation13], %s440
        %v443 = vld [vmem:[%s378] sm:$0xf]
        %v444 = vld [vmem:[#allocation7] sm:$0xf]
        %v445 = vld [vmem:[#allocation7 + $0x4] sm:$0xf]
        %v446 = vld [vmem:[#allocation7 + $0x8] sm:$0xf]
        %v447 = vld [vmem:[#allocation7 + $0xc] sm:$0xf]
        %v448 = vld [vmem:[%s3] sm:$0x1]
        %v450 = vlaneseq
        %v451 = vshrl.u32 %v450, 7
        %v452 = vsub.s32 0, %v451
        %v453 = vrot.slane %v448, %v452
        %v459 = vunpack.c.l.b16 %v444
        %v460 = vunpack.c.l.b16 %v445
        %v461 = vunpack.c.l.b16 %v446
        %v462 = vunpack.c.l.b16 %v447
        %v463 = vpack.c.b16 %v460, %v459
        %v464 = vpack.c.b16 %v462, %v461
        %vm467 = vcmask 261120
        %v469 = vsel %vm467, %v443, 0
        %471 = vmatprep.subr.bf16.mxu0 0
        %472 = vmatpush1.bf16.msra.mxu0 0
        %473 = vmatprep.subr.bf16.mxu0 0
        %474 = vmatpush1.bf16.msra.mxu0 0
        %475 = vmatprep.subr.bf16.mxu0 0
        %476 = vmatpush1.bf16.msra.mxu0 0
        %477 = vmatprep.subr.bf16.mxu0 0
        %478 = vmatpush1.bf16.msra.mxu0 0
        %479 = vmatprep.subr.bf16.mxu0 0
        %480 = vmatpush1.bf16.msra.mxu0 0
        %481 = vmatprep.subr.bf16.mxu0 0
        %482 = vmatpush1.bf16.msra.mxu0 0
        %483 = vmatprep.subr.bf16.mxu0 0
        %484 = vmatpush1.bf16.msra.mxu0 %v464
        %485 = vmatprep.subr.bf16.mxu0 0
        %486 = vmatpush1.bf16.msra.mxu0 %v463
        %487 = vmatprep.subr.bf16.mxu0 0
        %488 = vmatpush2.bf16.msra.mxu0 0
        %489 = vmatprep.subr.bf16.mxu0 0
        %490 = vmatpush2.bf16.msra.mxu0 0
        %491 = vmatprep.subr.bf16.mxu0 0
        %492 = vmatpush2.bf16.msra.mxu0 0
        %493 = vmatprep.subr.bf16.mxu0 0
        %494 = vmatpush2.bf16.msra.mxu0 0
        %495 = vmatprep.subr.bf16.mxu0 0
        %496 = vmatpush2.bf16.msra.mxu0 0
        %497 = vmatprep.subr.bf16.mxu0 0
        %498 = vmatpush2.bf16.msra.mxu0 0
        %499 = vmatprep.subr.bf16.mxu0 0
        %500 = vmatpush2.bf16.msra.mxu0 0
        %501 = vmatprep.subr.bf16.mxu0 0
        %502 = vmatpush2.bf16.msra.mxu0 0
        %503 = vmatprep.mubr.bf16.mxu0 0
        %504 = vmatmul.mubr.bf16.gmra.mxu0 %v469
        %v505 = vpop.f32.mrf.mxu0
        %v506 = vadd.f32 %v453, %v505
        %v507 = vpop.f32.mrf.mxu0
        %v508 = vpop.f32.mrf.mxu0
        %v509 = vpop.f32.mrf.mxu0
        %510 = vdwg.mxu0
        %v511 = vld [vmem:[#allocation8] sm:$0xf]
        %v512 = vld [vmem:[#allocation8 + $0x4] sm:$0xf]
        %s513 = scalar_lea.vmem [#allocation8], 8
        %v514 = vld [vmem:[%s513] sm:$0xf]
        %v515 = vld [vmem:[%s513 + $0x4] sm:$0xf]
        %v516 = vld [vmem:[%s387] sm:$0x1]
        %v517 = vld [vmem:[%s387 + $0x1] sm:$0x1]
        %v518 = vpack.c.bf16 %v516, %v516
        %v521 = vunpack.c.l.b16 %v511
        %v522 = vunpack.c.l.b16 %v512
        %v523 = vpack.c.b16 %v522, %v521
        %vm525 = vcmask 130048
        %v527 = vsel %vm525, %v518, 0
        %529 = vmatprep.subr.bf16.mxu0 0
        %530 = vmatpush1.bf16.msra.mxu0 0
        %531 = vmatprep.subr.bf16.mxu0 0
        %532 = vmatpush1.bf16.msra.mxu0 0
        %533 = vmatprep.subr.bf16.mxu0 0
        %534 = vmatpush1.bf16.msra.mxu0 0
        %535 = vmatprep.subr.bf16.mxu0 0
        %536 = vmatpush1.bf16.msra.mxu0 0
        %537 = vmatprep.subr.bf16.mxu0 0
        %538 = vmatpush1.bf16.msra.mxu0 0
        %539 = vmatprep.subr.bf16.mxu0 0
        %540 = vmatpush1.bf16.msra.mxu0 0
        %541 = vmatprep.subr.bf16.mxu0 0
        %542 = vmatpush1.bf16.msra.mxu0 0
        %543 = vmatprep.subr.bf16.mxu0 0
        %544 = vmatpush1.bf16.msra.mxu0 %v523
        %545 = vmatprep.subr.bf16.mxu0 0
        %546 = vmatpush2.bf16.msra.mxu0 0
        %547 = vmatprep.subr.bf16.mxu0 0
        %548 = vmatpush2.bf16.msra.mxu0 0
        %549 = vmatprep.subr.bf16.mxu0 0
        %550 = vmatpush2.bf16.msra.mxu0 0
        %551 = vmatprep.subr.bf16.mxu0 0
        %552 = vmatpush2.bf16.msra.mxu0 0
        %553 = vmatprep.subr.bf16.mxu0 0
        %554 = vmatpush2.bf16.msra.mxu0 0
        %555 = vmatprep.subr.bf16.mxu0 0
        %556 = vmatpush2.bf16.msra.mxu0 0
        %557 = vmatprep.subr.bf16.mxu0 0
        %558 = vmatpush2.bf16.msra.mxu0 0
        %559 = vmatprep.subr.bf16.mxu0 0
        %560 = vmatpush2.bf16.msra.mxu0 0
        %561 = vmatprep.mubr.bf16.mxu0 0
        %562 = vmatmul.mubr.bf16.gmra.mxu0 %v527
        %v563 = vpop.f32.mrf.mxu0
        %v564 = vadd.f32 0.0, %v563
        %v565 = vpop.f32.mrf.mxu0
        %v566 = vpop.f32.mrf.mxu0
        %v567 = vpop.f32.mrf.mxu0
        %568 = vdwg.mxu0
        %v569 = vadd.f32 %v506, %v564
        %v570 = vxor.u32 %v569, 2147483648
        %v571 = vmul.f32 %v570, 1.442695
        %v572 = vpow.pop %v571
        %v573 = vadd.f32 %v572, 1.0
        %v574 = vrcp.pop %v573
        %v575 = vmul.f32 1.0, %v574
        %v576 = vtanh.pop %v569
        %578 = vrot.lane.b32.xlu0 %v517, 16
        %v579 = vpop.permute.xlu0 %578
        %v581 = vmul.f32 %v575, %v579
        %583 = vrot.lane.b32.xlu0 %v576, 80
        %v584 = vpop.permute.xlu0 %583
        %v586 = vmul.f32 %v575, %v584
        %588 = vrot.lane.b32.xlu0 %v586, 16
        %v589 = vpop.permute.xlu0 %588
        %v591 = vadd.f32 %v581, %v589
        %v592 = vtanh.pop %v591
        %594 = vrot.lane.b32.xlu0 %v592, 16
        %v595 = vpop.permute.xlu0 %594
        %v597 = vmul.f32 %v575, %v595
        %v598 = vadd.f32 %v597, 0.0
        %v599 = vpack.c.bf16 %v597, %v597
        %601 = vrot.lane.b32.xlu0 %v599, 96
        %v602 = vpop.permute.xlu0 %601
        %v604 = vsel %vm525, %v602, 0
        %606 = vmatprep.subr.bf16.mxu0 0
        %607 = vmatpush1.bf16.msra.mxu0 0
        %608 = vmatprep.subr.bf16.mxu0 0
        %609 = vmatpush1.bf16.msra.mxu0 0
        %610 = vmatprep.subr.bf16.mxu0 0
        %611 = vmatpush1.bf16.msra.mxu0 0
        %612 = vmatprep.subr.bf16.mxu0 0
        %613 = vmatpush1.bf16.msra.mxu0 0
        %614 = vmatprep.subr.bf16.mxu0 0
        %615 = vmatpush1.bf16.msra.mxu0 0
        %616 = vmatprep.subr.bf16.mxu0 0
        %617 = vmatpush1.bf16.msra.mxu0 0
        %618 = vmatprep.subr.bf16.mxu0 0
        %619 = vmatpush1.bf16.msra.mxu0 0
        %620 = vmatprep.subr.bf16.mxu0 0
        %621 = vmatpush1.bf16.msra.mxu0 %v523
        %622 = vmatprep.subr.bf16.mxu0 0
        %623 = vmatpush2.bf16.msra.mxu0 0
        %624 = vmatprep.subr.bf16.mxu0 0
        %625 = vmatpush2.bf16.msra.mxu0 0
        %626 = vmatprep.subr.bf16.mxu0 0
        %627 = vmatpush2.bf16.msra.mxu0 0
        %628 = vmatprep.subr.bf16.mxu0 0
        %629 = vmatpush2.bf16.msra.mxu0 0
        %630 = vmatprep.subr.bf16.mxu0 0
        %631 = vmatpush2.bf16.msra.mxu0 0
        %632 = vmatprep.subr.bf16.mxu0 0
        %633 = vmatpush2.bf16.msra.mxu0 0
        %634 = vmatprep.subr.bf16.mxu0 0
        %635 = vmatpush2.bf16.msra.mxu0 0
        %636 = vmatprep.subr.bf16.mxu0 0
        %637 = vmatpush2.bf16.msra.mxu0 0
        %638 = vmatprep.mubr.bf16.mxu0 0
        %639 = vmatmul.mubr.bf16.gmra.mxu0 %v604
        %v640 = vpop.f32.mrf.mxu0
        %v641 = vadd.f32 0.0, %v640
        %v642 = vpop.f32.mrf.mxu0
        %v643 = vpop.f32.mrf.mxu0
        %v644 = vpop.f32.mrf.mxu0
        %645 = vdwg.mxu0
        %v647 = vrot.slane %v641, 7
        %v649 = vadd.f32 %v506, %v647
        %v650 = vxor.u32 %v649, 2147483648
        %v651 = vmul.f32 %v650, 1.442695
        %v652 = vpow.pop %v651
        %v653 = vadd.f32 %v652, 1.0
        %v654 = vrcp.pop %v653
        %v655 = vmul.f32 1.0, %v654
        %v656 = vtanh.pop %v649
        %v658 = vrot.slane %v591, 7
        %v660 = vmul.f32 %v655, %v658
        %662 = vrot.lane.b32.xlu0 %v656, 80
        %v663 = vpop.permute.xlu0 %662
        %v665 = vmul.f32 %v655, %v663
        %667 = vrot.lane.b32.xlu0 %v665, 16
        %v668 = vpop.permute.xlu0 %667
        %v670 = vadd.f32 %v660, %v668
        %v671 = vtanh.pop %v670
        %673 = vrot.lane.b32.xlu0 %v671, 16
        %v674 = vpop.permute.xlu0 %673
        %v676 = vmul.f32 %v655, %v674
        %v678 = vrot.slane %v676, 1
        %v680 = vadd.f32 %v598, %v678
        %v681 = vpack.c.bf16 %v676, %v676
        %v683 = vshrl.u32 %v681, 16
        %685 = vrot.lane.b32.xlu0 %v683, 96
        %v686 = vpop.permute.xlu0 %685
        %v688 = vsel %vm525, %v686, 0
        %690 = vmatprep.subr.bf16.mxu0 0
        %691 = vmatpush1.bf16.msra.mxu0 0
        %692 = vmatprep.subr.bf16.mxu0 0
        %693 = vmatpush1.bf16.msra.mxu0 0
        %694 = vmatprep.subr.bf16.mxu0 0
        %695 = vmatpush1.bf16.msra.mxu0 0
        %696 = vmatprep.subr.bf16.mxu0 0
        %697 = vmatpush1.bf16.msra.mxu0 0
        %698 = vmatprep.subr.bf16.mxu0 0
        %699 = vmatpush1.bf16.msra.mxu0 0
        %700 = vmatprep.subr.bf16.mxu0 0
        %701 = vmatpush1.bf16.msra.mxu0 0
        %702 = vmatprep.subr.bf16.mxu0 0
        %703 = vmatpush1.bf16.msra.mxu0 0
        %704 = vmatprep.subr.bf16.mxu0 0
        %705 = vmatpush1.bf16.msra.mxu0 %v523
        %706 = vmatprep.subr.bf16.mxu0 0
        %707 = vmatpush2.bf16.msra.mxu0 0
        %708 = vmatprep.subr.bf16.mxu0 0
        %709 = vmatpush2.bf16.msra.mxu0 0
        %710 = vmatprep.subr.bf16.mxu0 0
        %711 = vmatpush2.bf16.msra.mxu0 0
        %712 = vmatprep.subr.bf16.mxu0 0
        %713 = vmatpush2.bf16.msra.mxu0 0
        %714 = vmatprep.subr.bf16.mxu0 0
        %715 = vmatpush2.bf16.msra.mxu0 0
        %716 = vmatprep.subr.bf16.mxu0 0
        %717 = vmatpush2.bf16.msra.mxu0 0
        %718 = vmatprep.subr.bf16.mxu0 0
        %719 = vmatpush2.bf16.msra.mxu0 0
        %720 = vmatprep.subr.bf16.mxu0 0
        %721 = vmatpush2.bf16.msra.mxu0 0
        %722 = vmatprep.mubr.bf16.mxu0 0
        %723 = vmatmul.mubr.bf16.gmra.mxu0 %v688
        %v724 = vpop.f32.mrf.mxu0
        %v725 = vadd.f32 0.0, %v724
        %v726 = vpop.f32.mrf.mxu0
        %v727 = vpop.f32.mrf.mxu0
        %v728 = vpop.f32.mrf.mxu0
        %729 = vdwg.mxu0
        %v731 = vrot.slane %v725, 6
        %v733 = vadd.f32 %v506, %v731
        %v734 = vxor.u32 %v733, 2147483648
        %v735 = vmul.f32 %v734, 1.442695
        %v736 = vpow.pop %v735
        %v737 = vadd.f32 %v736, 1.0
        %v738 = vrcp.pop %v737
        %v739 = vmul.f32 1.0, %v738
        %v740 = vtanh.pop %v733
        %v742 = vrot.slane %v670, 7
        %v744 = vmul.f32 %v739, %v742
        %746 = vrot.lane.b32.xlu0 %v740, 80
        %v747 = vpop.permute.xlu0 %746
        %v749 = vmul.f32 %v739, %v747
        %751 = vrot.lane.b32.xlu0 %v749, 16
        %v752 = vpop.permute.xlu0 %751
        %v754 = vadd.f32 %v744, %v752
        %v755 = vtanh.pop %v754
        %757 = vrot.lane.b32.xlu0 %v755, 16
        %v758 = vpop.permute.xlu0 %757
        %v760 = vmul.f32 %v739, %v758
        %v762 = vrot.slane %v760, 2
        %v764 = vadd.f32 %v680, %v762
        %v765 = vpack.c.bf16 %v760, %v760
        %v767 = vrot.slane %v765, 1
        %768 = vrot.lane.b32.xlu0 %v767, 96
        %v769 = vpop.permute.xlu0 %768
        %v771 = vsel %vm525, %v769, 0
        %773 = vmatprep.subr.bf16.mxu0 0
        %774 = vmatpush1.bf16.msra.mxu0 0
        %775 = vmatprep.subr.bf16.mxu0 0
        %776 = vmatpush1.bf16.msra.mxu0 0
        %777 = vmatprep.subr.bf16.mxu0 0
        %778 = vmatpush1.bf16.msra.mxu0 0
        %779 = vmatprep.subr.bf16.mxu0 0
        %780 = vmatpush1.bf16.msra.mxu0 0
        %781 = vmatprep.subr.bf16.mxu0 0
        %782 = vmatpush1.bf16.msra.mxu0 0
        %783 = vmatprep.subr.bf16.mxu0 0
        %784 = vmatpush1.bf16.msra.mxu0 0
        %785 = vmatprep.subr.bf16.mxu0 0
        %786 = vmatpush1.bf16.msra.mxu0 0
        %787 = vmatprep.subr.bf16.mxu0 0
        %788 = vmatpush1.bf16.msra.mxu0 %v523
        %789 = vmatprep.subr.bf16.mxu0 0
        %790 = vmatpush2.bf16.msra.mxu0 0
        %791 = vmatprep.subr.bf16.mxu0 0
        %792 = vmatpush2.bf16.msra.mxu0 0
        %793 = vmatprep.subr.bf16.mxu0 0
        %794 = vmatpush2.bf16.msra.mxu0 0
        %795 = vmatprep.subr.bf16.mxu0 0
        %796 = vmatpush2.bf16.msra.mxu0 0
        %797 = vmatprep.subr.bf16.mxu0 0
        %798 = vmatpush2.bf16.msra.mxu0 0
        %799 = vmatprep.subr.bf16.mxu0 0
        %800 = vmatpush2.bf16.msra.mxu0 0
        %801 = vmatprep.subr.bf16.mxu0 0
        %802 = vmatpush2.bf16.msra.mxu0 0
        %803 = vmatprep.subr.bf16.mxu0 0
        %804 = vmatpush2.bf16.msra.mxu0 0
        %805 = vmatprep.mubr.bf16.mxu0 0
        %806 = vmatmul.mubr.bf16.gmra.mxu0 %v771
        %v807 = vpop.f32.mrf.mxu0
        %v808 = vadd.f32 0.0, %v807
        %v809 = vpop.f32.mrf.mxu0
        %v810 = vpop.f32.mrf.mxu0
        %v811 = vpop.f32.mrf.mxu0
        %812 = vdwg.mxu0
        %v814 = vrot.slane %v808, 5
        %v816 = vadd.f32 %v506, %v814
        %v817 = vxor.u32 %v816, 2147483648
        %v818 = vmul.f32 %v817, 1.442695
        %v819 = vpow.pop %v818
        %v820 = vadd.f32 %v819, 1.0
        %v821 = vrcp.pop %v820
        %v822 = vmul.f32 1.0, %v821
        %v823 = vtanh.pop %v816
        %v825 = vrot.slane %v754, 7
        %v827 = vmul.f32 %v822, %v825
        %829 = vrot.lane.b32.xlu0 %v823, 80
        %v830 = vpop.permute.xlu0 %829
        %v832 = vmul.f32 %v822, %v830
        %834 = vrot.lane.b32.xlu0 %v832, 16
        %v835 = vpop.permute.xlu0 %834
        %v837 = vadd.f32 %v827, %v835
        %v838 = vtanh.pop %v837
        %840 = vrot.lane.b32.xlu0 %v838, 16
        %v841 = vpop.permute.xlu0 %840
        %v843 = vmul.f32 %v822, %v841
        %v845 = vrot.slane %v843, 3
        %v847 = vadd.f32 %v764, %v845
        %v848 = vpack.c.bf16 %v843, %v843
        %v850 = vshrl.u32 %v848, 16
        %v852 = vrot.slane %v850, 1
        %853 = vrot.lane.b32.xlu0 %v852, 96
        %v854 = vpop.permute.xlu0 %853
        %v856 = vsel %vm525, %v854, 0
        %858 = vmatprep.subr.bf16.mxu0 0
        %859 = vmatpush1.bf16.msra.mxu0 0
        %860 = vmatprep.subr.bf16.mxu0 0
        %861 = vmatpush1.bf16.msra.mxu0 0
        %862 = vmatprep.subr.bf16.mxu0 0
        %863 = vmatpush1.bf16.msra.mxu0 0
        %864 = vmatprep.subr.bf16.mxu0 0
        %865 = vmatpush1.bf16.msra.mxu0 0
        %866 = vmatprep.subr.bf16.mxu0 0
        %867 = vmatpush1.bf16.msra.mxu0 0
        %868 = vmatprep.subr.bf16.mxu0 0
        %869 = vmatpush1.bf16.msra.mxu0 0
        %870 = vmatprep.subr.bf16.mxu0 0
        %871 = vmatpush1.bf16.msra.mxu0 0
        %872 = vmatprep.subr.bf16.mxu0 0
        %873 = vmatpush1.bf16.msra.mxu0 %v523
        %874 = vmatprep.subr.bf16.mxu0 0
        %875 = vmatpush2.bf16.msra.mxu0 0
        %876 = vmatprep.subr.bf16.mxu0 0
        %877 = vmatpush2.bf16.msra.mxu0 0
        %878 = vmatprep.subr.bf16.mxu0 0
        %879 = vmatpush2.bf16.msra.mxu0 0
        %880 = vmatprep.subr.bf16.mxu0 0
        %881 = vmatpush2.bf16.msra.mxu0 0
        %882 = vmatprep.subr.bf16.mxu0 0
        %883 = vmatpush2.bf16.msra.mxu0 0
        %884 = vmatprep.subr.bf16.mxu0 0
        %885 = vmatpush2.bf16.msra.mxu0 0
        %886 = vmatprep.subr.bf16.mxu0 0
        %887 = vmatpush2.bf16.msra.mxu0 0
        %888 = vmatprep.subr.bf16.mxu0 0
        %889 = vmatpush2.bf16.msra.mxu0 0
        %890 = vmatprep.mubr.bf16.mxu0 0
        %891 = vmatmul.mubr.bf16.gmra.mxu0 %v856
        %v892 = vpop.f32.mrf.mxu0
        %v893 = vadd.f32 0.0, %v892
        %v894 = vpop.f32.mrf.mxu0
        %v895 = vpop.f32.mrf.mxu0
        %v896 = vpop.f32.mrf.mxu0
        %897 = vdwg.mxu0
        %v899 = vrot.slane %v893, 4
        %v901 = vadd.f32 %v506, %v899
        %v902 = vxor.u32 %v901, 2147483648
        %v903 = vmul.f32 %v902, 1.442695
        %v904 = vpow.pop %v903
        %v905 = vadd.f32 %v904, 1.0
        %v906 = vrcp.pop %v905
        %v907 = vmul.f32 1.0, %v906
        %v908 = vtanh.pop %v901
        %v910 = vrot.slane %v837, 7
        %v912 = vmul.f32 %v907, %v910
        %914 = vrot.lane.b32.xlu0 %v908, 80
        %v915 = vpop.permute.xlu0 %914
        %v917 = vmul.f32 %v907, %v915
        %919 = vrot.lane.b32.xlu0 %v917, 16
        %v920 = vpop.permute.xlu0 %919
        %v922 = vadd.f32 %v912, %v920
        %v923 = vtanh.pop %v922
        %925 = vrot.lane.b32.xlu0 %v923, 16
        %v926 = vpop.permute.xlu0 %925
        %v928 = vmul.f32 %v907, %v926
        %v930 = vrot.slane %v928, 4
        %v932 = vadd.f32 %v847, %v930
        %v933 = vpack.c.bf16 %v928, %v928
        %v935 = vrot.slane %v933, 2
        %936 = vrot.lane.b32.xlu0 %v935, 96
        %v937 = vpop.permute.xlu0 %936
        %v939 = vsel %vm525, %v937, 0
        %941 = vmatprep.subr.bf16.mxu0 0
        %942 = vmatpush1.bf16.msra.mxu0 0
        %943 = vmatprep.subr.bf16.mxu0 0
        %944 = vmatpush1.bf16.msra.mxu0 0
        %945 = vmatprep.subr.bf16.mxu0 0
        %946 = vmatpush1.bf16.msra.mxu0 0
        %947 = vmatprep.subr.bf16.mxu0 0
        %948 = vmatpush1.bf16.msra.mxu0 0
        %949 = vmatprep.subr.bf16.mxu0 0
        %950 = vmatpush1.bf16.msra.mxu0 0
        %951 = vmatprep.subr.bf16.mxu0 0
        %952 = vmatpush1.bf16.msra.mxu0 0
        %953 = vmatprep.subr.bf16.mxu0 0
        %954 = vmatpush1.bf16.msra.mxu0 0
        %955 = vmatprep.subr.bf16.mxu0 0
        %956 = vmatpush1.bf16.msra.mxu0 %v523
        %957 = vmatprep.subr.bf16.mxu0 0
        %958 = vmatpush2.bf16.msra.mxu0 0
        %959 = vmatprep.subr.bf16.mxu0 0
        %960 = vmatpush2.bf16.msra.mxu0 0
        %961 = vmatprep.subr.bf16.mxu0 0
        %962 = vmatpush2.bf16.msra.mxu0 0
        %963 = vmatprep.subr.bf16.mxu0 0
        %964 = vmatpush2.bf16.msra.mxu0 0
        %965 = vmatprep.subr.bf16.mxu0 0
        %966 = vmatpush2.bf16.msra.mxu0 0
        %967 = vmatprep.subr.bf16.mxu0 0
        %968 = vmatpush2.bf16.msra.mxu0 0
        %969 = vmatprep.subr.bf16.mxu0 0
        %970 = vmatpush2.bf16.msra.mxu0 0
        %971 = vmatprep.subr.bf16.mxu0 0
        %972 = vmatpush2.bf16.msra.mxu0 0
        %973 = vmatprep.mubr.bf16.mxu0 0
        %974 = vmatmul.mubr.bf16.gmra.mxu0 %v939
        %v975 = vpop.f32.mrf.mxu0
        %v976 = vadd.f32 0.0, %v975
        %v977 = vpop.f32.mrf.mxu0
        %v978 = vpop.f32.mrf.mxu0
        %v979 = vpop.f32.mrf.mxu0
        %980 = vdwg.mxu0
        %v982 = vrot.slane %v976, 3
        %v984 = vadd.f32 %v506, %v982
        %v985 = vxor.u32 %v984, 2147483648
        %v986 = vmul.f32 %v985, 1.442695
        %v987 = vpow.pop %v986
        %v988 = vadd.f32 %v987, 1.0
        %v989 = vrcp.pop %v988
        %v990 = vmul.f32 1.0, %v989
        %v991 = vtanh.pop %v984
        %v993 = vrot.slane %v922, 7
        %v995 = vmul.f32 %v990, %v993
        %997 = vrot.lane.b32.xlu0 %v991, 80
        %v998 = vpop.permute.xlu0 %997
        %v1000 = vmul.f32 %v990, %v998
        %1002 = vrot.lane.b32.xlu0 %v1000, 16
        %v1003 = vpop.permute.xlu0 %1002
        %v1005 = vadd.f32 %v995, %v1003
        %v1006 = vtanh.pop %v1005
        %1008 = vrot.lane.b32.xlu0 %v1006, 16
        %v1009 = vpop.permute.xlu0 %1008
        %v1011 = vmul.f32 %v990, %v1009
        %v1013 = vrot.slane %v1011, 5
        %v1015 = vadd.f32 %v932, %v1013
        %v1016 = vpack.c.bf16 %v1011, %v1011
        %v1018 = vshrl.u32 %v1016, 16
        %v1020 = vrot.slane %v1018, 2
        %1021 = vrot.lane.b32.xlu0 %v1020, 96
        %v1022 = vpop.permute.xlu0 %1021
        %v1024 = vsel %vm525, %v1022, 0
        %1026 = vmatprep.subr.bf16.mxu0 0
        %1027 = vmatpush1.bf16.msra.mxu0 0
        %1028 = vmatprep.subr.bf16.mxu0 0
        %1029 = vmatpush1.bf16.msra.mxu0 0
        %1030 = vmatprep.subr.bf16.mxu0 0
        %1031 = vmatpush1.bf16.msra.mxu0 0
        %1032 = vmatprep.subr.bf16.mxu0 0
        %1033 = vmatpush1.bf16.msra.mxu0 0
        %1034 = vmatprep.subr.bf16.mxu0 0
        %1035 = vmatpush1.bf16.msra.mxu0 0
        %1036 = vmatprep.subr.bf16.mxu0 0
        %1037 = vmatpush1.bf16.msra.mxu0 0
        %1038 = vmatprep.subr.bf16.mxu0 0
        %1039 = vmatpush1.bf16.msra.mxu0 0
        %1040 = vmatprep.subr.bf16.mxu0 0
        %1041 = vmatpush1.bf16.msra.mxu0 %v523
        %1042 = vmatprep.subr.bf16.mxu0 0
        %1043 = vmatpush2.bf16.msra.mxu0 0
        %1044 = vmatprep.subr.bf16.mxu0 0
        %1045 = vmatpush2.bf16.msra.mxu0 0
        %1046 = vmatprep.subr.bf16.mxu0 0
        %1047 = vmatpush2.bf16.msra.mxu0 0
        %1048 = vmatprep.subr.bf16.mxu0 0
        %1049 = vmatpush2.bf16.msra.mxu0 0
        %1050 = vmatprep.subr.bf16.mxu0 0
        %1051 = vmatpush2.bf16.msra.mxu0 0
        %1052 = vmatprep.subr.bf16.mxu0 0
        %1053 = vmatpush2.bf16.msra.mxu0 0
        %1054 = vmatprep.subr.bf16.mxu0 0
        %1055 = vmatpush2.bf16.msra.mxu0 0
        %1056 = vmatprep.subr.bf16.mxu0 0
        %1057 = vmatpush2.bf16.msra.mxu0 0
        %1058 = vmatprep.mubr.bf16.mxu0 0
        %1059 = vmatmul.mubr.bf16.gmra.mxu0 %v1024
        %v1060 = vpop.f32.mrf.mxu0
        %v1061 = vadd.f32 0.0, %v1060
        %v1062 = vpop.f32.mrf.mxu0
        %v1063 = vpop.f32.mrf.mxu0
        %v1064 = vpop.f32.mrf.mxu0
        %1065 = vdwg.mxu0
        %v1067 = vrot.slane %v1061, 2
        %v1069 = vadd.f32 %v506, %v1067
        %v1070 = vxor.u32 %v1069, 2147483648
        %v1071 = vmul.f32 %v1070, 1.442695
        %v1072 = vpow.pop %v1071
        %v1073 = vadd.f32 %v1072, 1.0
        %v1074 = vrcp.pop %v1073
        %v1075 = vmul.f32 1.0, %v1074
        %v1076 = vtanh.pop %v1069
        %v1078 = vrot.slane %v1005, 7
        %v1080 = vmul.f32 %v1075, %v1078
        %1082 = vrot.lane.b32.xlu0 %v1076, 80
        %v1083 = vpop.permute.xlu0 %1082
        %v1085 = vmul.f32 %v1075, %v1083
        %1087 = vrot.lane.b32.xlu0 %v1085, 16
        %v1088 = vpop.permute.xlu0 %1087
        %v1090 = vadd.f32 %v1080, %v1088
        %v1091 = vtanh.pop %v1090
        %1093 = vrot.lane.b32.xlu0 %v1091, 16
        %v1094 = vpop.permute.xlu0 %1093
        %v1096 = vmul.f32 %v1075, %v1094
        %v1098 = vrot.slane %v1096, 6
        %v1100 = vadd.f32 %v1015, %v1098
        %v1101 = vpack.c.bf16 %v1096, %v1096
        %v1103 = vrot.slane %v1101, 3
        %1104 = vrot.lane.b32.xlu0 %v1103, 96
        %v1105 = vpop.permute.xlu0 %1104
        %v1107 = vsel %vm525, %v1105, 0
        %1109 = vmatprep.subr.bf16.mxu0 0
        %1110 = vmatpush1.bf16.msra.mxu0 0
        %1111 = vmatprep.subr.bf16.mxu0 0
        %1112 = vmatpush1.bf16.msra.mxu0 0
        %1113 = vmatprep.subr.bf16.mxu0 0
        %1114 = vmatpush1.bf16.msra.mxu0 0
        %1115 = vmatprep.subr.bf16.mxu0 0
        %1116 = vmatpush1.bf16.msra.mxu0 0
        %1117 = vmatprep.subr.bf16.mxu0 0
        %1118 = vmatpush1.bf16.msra.mxu0 0
        %1119 = vmatprep.subr.bf16.mxu0 0
        %1120 = vmatpush1.bf16.msra.mxu0 0
        %1121 = vmatprep.subr.bf16.mxu0 0
        %1122 = vmatpush1.bf16.msra.mxu0 0
        %1123 = vmatprep.subr.bf16.mxu0 0
        %1124 = vmatpush1.bf16.msra.mxu0 %v523
        %1125 = vmatprep.subr.bf16.mxu0 0
        %1126 = vmatpush2.bf16.msra.mxu0 0
        %1127 = vmatprep.subr.bf16.mxu0 0
        %1128 = vmatpush2.bf16.msra.mxu0 0
        %1129 = vmatprep.subr.bf16.mxu0 0
        %1130 = vmatpush2.bf16.msra.mxu0 0
        %1131 = vmatprep.subr.bf16.mxu0 0
        %1132 = vmatpush2.bf16.msra.mxu0 0
        %1133 = vmatprep.subr.bf16.mxu0 0
        %1134 = vmatpush2.bf16.msra.mxu0 0
        %1135 = vmatprep.subr.bf16.mxu0 0
        %1136 = vmatpush2.bf16.msra.mxu0 0
        %1137 = vmatprep.subr.bf16.mxu0 0
        %1138 = vmatpush2.bf16.msra.mxu0 0
        %1139 = vmatprep.subr.bf16.mxu0 0
        %1140 = vmatpush2.bf16.msra.mxu0 0
        %1141 = vmatprep.mubr.bf16.mxu0 0
        %1142 = vmatmul.mubr.bf16.gmra.mxu0 %v1107
        %v1143 = vpop.f32.mrf.mxu0
        %v1144 = vadd.f32 0.0, %v1143
        %v1145 = vpop.f32.mrf.mxu0
        %v1146 = vpop.f32.mrf.mxu0
        %v1147 = vpop.f32.mrf.mxu0
        %1148 = vdwg.mxu0
        %v1150 = vrot.slane %v1144, 1
        %v1152 = vadd.f32 %v506, %v1150
        %v1153 = vxor.u32 %v1152, 2147483648
        %v1154 = vmul.f32 %v1153, 1.442695
        %v1155 = vpow.pop %v1154
        %v1156 = vadd.f32 %v1155, 1.0
        %v1157 = vrcp.pop %v1156
        %v1158 = vmul.f32 1.0, %v1157
        %v1159 = vtanh.pop %v1152
        %v1161 = vrot.slane %v1090, 7
        %v1163 = vmul.f32 %v1158, %v1161
        %1165 = vrot.lane.b32.xlu0 %v1159, 80
        %v1166 = vpop.permute.xlu0 %1165
        %v1168 = vmul.f32 %v1158, %v1166
        %1170 = vrot.lane.b32.xlu0 %v1168, 16
        %v1171 = vpop.permute.xlu0 %1170
        %v1173 = vadd.f32 %v1163, %v1171
        %v1174 = vtanh.pop %v1173
        %1176 = vrot.lane.b32.xlu0 %v1174, 16
        %v1177 = vpop.permute.xlu0 %1176
        %v1179 = vmul.f32 %v1158, %v1177
        %v1181 = vrot.slane %v1179, 7
        %v1183 = vadd.f32 %v1100, %v1181
        %v1184 = vld [vmem:[%s387 + $0x2] sm:$0x1]
        %v1185 = vld [vmem:[%s387 + $0x3] sm:$0x1]
        %v1186 = vpack.c.bf16 %v1184, %v1184
        %v1189 = vunpack.c.l.b16 %v514
        %v1190 = vunpack.c.l.b16 %v515
        %v1191 = vpack.c.b16 %v1190, %v1189
        %v1194 = vsel %vm525, %v1186, 0
        %1196 = vmatprep.subr.bf16.mxu0 0
        %1197 = vmatpush1.bf16.msra.mxu0 0
        %1198 = vmatprep.subr.bf16.mxu0 0
        %1199 = vmatpush1.bf16.msra.mxu0 0
        %1200 = vmatprep.subr.bf16.mxu0 0
        %1201 = vmatpush1.bf16.msra.mxu0 0
        %1202 = vmatprep.subr.bf16.mxu0 0
        %1203 = vmatpush1.bf16.msra.mxu0 0
        %1204 = vmatprep.subr.bf16.mxu0 0
        %1205 = vmatpush1.bf16.msra.mxu0 0
        %1206 = vmatprep.subr.bf16.mxu0 0
        %1207 = vmatpush1.bf16.msra.mxu0 0
        %1208 = vmatprep.subr.bf16.mxu0 0
        %1209 = vmatpush1.bf16.msra.mxu0 0
        %1210 = vmatprep.subr.bf16.mxu0 0
        %1211 = vmatpush1.bf16.msra.mxu0 %v1191
        %1212 = vmatprep.subr.bf16.mxu0 0
        %1213 = vmatpush2.bf16.msra.mxu0 0
        %1214 = vmatprep.subr.bf16.mxu0 0
        %1215 = vmatpush2.bf16.msra.mxu0 0
        %1216 = vmatprep.subr.bf16.mxu0 0
        %1217 = vmatpush2.bf16.msra.mxu0 0
        %1218 = vmatprep.subr.bf16.mxu0 0
        %1219 = vmatpush2.bf16.msra.mxu0 0
        %1220 = vmatprep.subr.bf16.mxu0 0
        %1221 = vmatpush2.bf16.msra.mxu0 0
        %1222 = vmatprep.subr.bf16.mxu0 0
        %1223 = vmatpush2.bf16.msra.mxu0 0
        %1224 = vmatprep.subr.bf16.mxu0 0
        %1225 = vmatpush2.bf16.msra.mxu0 0
        %1226 = vmatprep.subr.bf16.mxu0 0
        %1227 = vmatpush2.bf16.msra.mxu0 0
        %1228 = vmatprep.mubr.bf16.mxu0 0
        %1229 = vmatmul.mubr.bf16.gmra.mxu0 %v1194
        %v1230 = vpop.f32.mrf.mxu0
        %v1231 = vadd.f32 0.0, %v1230
        %v1232 = vpop.f32.mrf.mxu0
        %v1233 = vpop.f32.mrf.mxu0
        %v1234 = vpop.f32.mrf.mxu0
        %1235 = vdwg.mxu0
        %v1237 = vrot.slane %v1231, 1
        %1238 = vrot.lane.b32.xlu0 %v1237, 64
        %v1239 = vpop.permute.xlu0 %1238
        %v1241 = vadd.f32 %v506, %v1239
        %v1242 = vxor.u32 %v1241, 2147483648
        %v1243 = vmul.f32 %v1242, 1.442695
        %v1244 = vpow.pop %v1243
        %v1245 = vadd.f32 %v1244, 1.0
        %v1246 = vrcp.pop %v1245
        %v1247 = vmul.f32 1.0, %v1246
        %v1248 = vtanh.pop %v1241
        %v1250 = vrot.slane %v1185, 1
        %1251 = vrot.lane.b32.xlu0 %v1250, 80
        %v1252 = vpop.permute.xlu0 %1251
        %v1254 = vmul.f32 %v1247, %v1252
        %1256 = vrot.lane.b32.xlu0 %v1248, 80
        %v1257 = vpop.permute.xlu0 %1256
        %v1259 = vmul.f32 %v1247, %v1257
        %1261 = vrot.lane.b32.xlu0 %v1259, 16
        %v1262 = vpop.permute.xlu0 %1261
        %v1264 = vadd.f32 %v1254, %v1262
        %v1265 = vtanh.pop %v1264
        %1267 = vrot.lane.b32.xlu0 %v1265, 16
        %v1268 = vpop.permute.xlu0 %1267
        %v1270 = vmul.f32 %v1247, %v1268
        %v1271 = vadd.f32 %v1270, 0.0
        %v1272 = vpack.c.bf16 %v1270, %v1270
        %v1274 = vshrl.u32 %v1272, 16
        %v1276 = vrot.slane %v1274, 3
        %1277 = vrot.lane.b32.xlu0 %v1276, 32
        %v1278 = vpop.permute.xlu0 %1277
        %v1280 = vsel %vm525, %v1278, 0
        %1282 = vmatprep.subr.bf16.mxu0 0
        %1283 = vmatpush1.bf16.msra.mxu0 0
        %1284 = vmatprep.subr.bf16.mxu0 0
        %1285 = vmatpush1.bf16.msra.mxu0 0
        %1286 = vmatprep.subr.bf16.mxu0 0
        %1287 = vmatpush1.bf16.msra.mxu0 0
        %1288 = vmatprep.subr.bf16.mxu0 0
        %1289 = vmatpush1.bf16.msra.mxu0 0
        %1290 = vmatprep.subr.bf16.mxu0 0
        %1291 = vmatpush1.bf16.msra.mxu0 0
        %1292 = vmatprep.subr.bf16.mxu0 0
        %1293 = vmatpush1.bf16.msra.mxu0 0
        %1294 = vmatprep.subr.bf16.mxu0 0
        %1295 = vmatpush1.bf16.msra.mxu0 0
        %1296 = vmatprep.subr.bf16.mxu0 0
        %1297 = vmatpush1.bf16.msra.mxu0 %v1191
        %1298 = vmatprep.subr.bf16.mxu0 0
        %1299 = vmatpush2.bf16.msra.mxu0 0
        %1300 = vmatprep.subr.bf16.mxu0 0
        %1301 = vmatpush2.bf16.msra.mxu0 0
        %1302 = vmatprep.subr.bf16.mxu0 0
        %1303 = vmatpush2.bf16.msra.mxu0 0
        %1304 = vmatprep.subr.bf16.mxu0 0
        %1305 = vmatpush2.bf16.msra.mxu0 0
        %1306 = vmatprep.subr.bf16.mxu0 0
        %1307 = vmatpush2.bf16.msra.mxu0 0
        %1308 = vmatprep.subr.bf16.mxu0 0
        %1309 = vmatpush2.bf16.msra.mxu0 0
        %1310 = vmatprep.subr.bf16.mxu0 0
        %1311 = vmatpush2.bf16.msra.mxu0 0
        %1312 = vmatprep.subr.bf16.mxu0 0
        %1313 = vmatpush2.bf16.msra.mxu0 0
        %1314 = vmatprep.mubr.bf16.mxu0 0
        %1315 = vmatmul.mubr.bf16.gmra.mxu0 %v1280
        %v1316 = vpop.f32.mrf.mxu0
        %v1317 = vadd.f32 0.0, %v1316
        %v1318 = vpop.f32.mrf.mxu0
        %v1319 = vpop.f32.mrf.mxu0
        %v1320 = vpop.f32.mrf.mxu0
        %1321 = vdwg.mxu0
        %v1323 = vrot.slane %v1317, 2
        %1324 = vrot.lane.b32.xlu0 %v1323, 64
        %v1325 = vpop.permute.xlu0 %1324
        %v1327 = vadd.f32 %v506, %v1325
        %v1328 = vxor.u32 %v1327, 2147483648
        %v1329 = vmul.f32 %v1328, 1.442695
        %v1330 = vpow.pop %v1329
        %v1331 = vadd.f32 %v1330, 1.0
        %v1332 = vrcp.pop %v1331
        %v1333 = vmul.f32 1.0, %v1332
        %v1334 = vtanh.pop %v1327
        %v1336 = vrot.slane %v1264, 1
        %v1338 = vmul.f32 %v1333, %v1336
        %1340 = vrot.lane.b32.xlu0 %v1334, 80
        %v1341 = vpop.permute.xlu0 %1340
        %v1343 = vmul.f32 %v1333, %v1341
        %1345 = vrot.lane.b32.xlu0 %v1343, 16
        %v1346 = vpop.permute.xlu0 %1345
        %v1348 = vadd.f32 %v1338, %v1346
        %v1349 = vtanh.pop %v1348
        %1351 = vrot.lane.b32.xlu0 %v1349, 16
        %v1352 = vpop.permute.xlu0 %1351
        %v1354 = vmul.f32 %v1333, %v1352
        %v1356 = vrot.slane %v1354, 7
        %v1358 = vadd.f32 %v1271, %v1356
        %v1359 = vpack.c.bf16 %v1354, %v1354
        %v1361 = vrot.slane %v1359, 3
        %1362 = vrot.lane.b32.xlu0 %v1361, 32
        %v1363 = vpop.permute.xlu0 %1362
        %v1365 = vsel %vm525, %v1363, 0
        %1367 = vmatprep.subr.bf16.mxu0 0
        %1368 = vmatpush1.bf16.msra.mxu0 0
        %1369 = vmatprep.subr.bf16.mxu0 0
        %1370 = vmatpush1.bf16.msra.mxu0 0
        %1371 = vmatprep.subr.bf16.mxu0 0
        %1372 = vmatpush1.bf16.msra.mxu0 0
        %1373 = vmatprep.subr.bf16.mxu0 0
        %1374 = vmatpush1.bf16.msra.mxu0 0
        %1375 = vmatprep.subr.bf16.mxu0 0
        %1376 = vmatpush1.bf16.msra.mxu0 0
        %1377 = vmatprep.subr.bf16.mxu0 0
        %1378 = vmatpush1.bf16.msra.mxu0 0
        %1379 = vmatprep.subr.bf16.mxu0 0
        %1380 = vmatpush1.bf16.msra.mxu0 0
        %1381 = vmatprep.subr.bf16.mxu0 0
        %1382 = vmatpush1.bf16.msra.mxu0 %v1191
        %1383 = vmatprep.subr.bf16.mxu0 0
        %1384 = vmatpush2.bf16.msra.mxu0 0
        %1385 = vmatprep.subr.bf16.mxu0 0
        %1386 = vmatpush2.bf16.msra.mxu0 0
        %1387 = vmatprep.subr.bf16.mxu0 0
        %1388 = vmatpush2.bf16.msra.mxu0 0
        %1389 = vmatprep.subr.bf16.mxu0 0
        %1390 = vmatpush2.bf16.msra.mxu0 0
        %1391 = vmatprep.subr.bf16.mxu0 0
        %1392 = vmatpush2.bf16.msra.mxu0 0
        %1393 = vmatprep.subr.bf16.mxu0 0
        %1394 = vmatpush2.bf16.msra.mxu0 0
        %1395 = vmatprep.subr.bf16.mxu0 0
        %1396 = vmatpush2.bf16.msra.mxu0 0
        %1397 = vmatprep.subr.bf16.mxu0 0
        %1398 = vmatpush2.bf16.msra.mxu0 0
        %1399 = vmatprep.mubr.bf16.mxu0 0
        %1400 = vmatmul.mubr.bf16.gmra.mxu0 %v1365
        %v1401 = vpop.f32.mrf.mxu0
        %v1402 = vadd.f32 0.0, %v1401
        %v1403 = vpop.f32.mrf.mxu0
        %v1404 = vpop.f32.mrf.mxu0
        %v1405 = vpop.f32.mrf.mxu0
        %1406 = vdwg.mxu0
        %v1408 = vrot.slane %v1402, 3
        %1409 = vrot.lane.b32.xlu0 %v1408, 64
        %v1410 = vpop.permute.xlu0 %1409
        %v1412 = vadd.f32 %v506, %v1410
        %v1413 = vxor.u32 %v1412, 2147483648
        %v1414 = vmul.f32 %v1413, 1.442695
        %v1415 = vpow.pop %v1414
        %v1416 = vadd.f32 %v1415, 1.0
        %v1417 = vrcp.pop %v1416
        %v1418 = vmul.f32 1.0, %v1417
        %v1419 = vtanh.pop %v1412
        %v1421 = vrot.slane %v1348, 1
        %v1423 = vmul.f32 %v1418, %v1421
        %1425 = vrot.lane.b32.xlu0 %v1419, 80
        %v1426 = vpop.permute.xlu0 %1425
        %v1428 = vmul.f32 %v1418, %v1426
        %1430 = vrot.lane.b32.xlu0 %v1428, 16
        %v1431 = vpop.permute.xlu0 %1430
        %v1433 = vadd.f32 %v1423, %v1431
        %v1434 = vtanh.pop %v1433
        %1436 = vrot.lane.b32.xlu0 %v1434, 16
        %v1437 = vpop.permute.xlu0 %1436
        %v1439 = vmul.f32 %v1418, %v1437
        %v1441 = vrot.slane %v1439, 6
        %v1443 = vadd.f32 %v1358, %v1441
        %v1444 = vpack.c.bf16 %v1439, %v1439
        %v1446 = vshrl.u32 %v1444, 16
        %v1448 = vrot.slane %v1446, 2
        %1449 = vrot.lane.b32.xlu0 %v1448, 32
        %v1450 = vpop.permute.xlu0 %1449
        %v1452 = vsel %vm525, %v1450, 0
        %1454 = vmatprep.subr.bf16.mxu0 0
        %1455 = vmatpush1.bf16.msra.mxu0 0
        %1456 = vmatprep.subr.bf16.mxu0 0
        %1457 = vmatpush1.bf16.msra.mxu0 0
        %1458 = vmatprep.subr.bf16.mxu0 0
        %1459 = vmatpush1.bf16.msra.mxu0 0
        %1460 = vmatprep.subr.bf16.mxu0 0
        %1461 = vmatpush1.bf16.msra.mxu0 0
        %1462 = vmatprep.subr.bf16.mxu0 0
        %1463 = vmatpush1.bf16.msra.mxu0 0
        %1464 = vmatprep.subr.bf16.mxu0 0
        %1465 = vmatpush1.bf16.msra.mxu0 0
        %1466 = vmatprep.subr.bf16.mxu0 0
        %1467 = vmatpush1.bf16.msra.mxu0 0
        %1468 = vmatprep.subr.bf16.mxu0 0
        %1469 = vmatpush1.bf16.msra.mxu0 %v1191
        %1470 = vmatprep.subr.bf16.mxu0 0
        %1471 = vmatpush2.bf16.msra.mxu0 0
        %1472 = vmatprep.subr.bf16.mxu0 0
        %1473 = vmatpush2.bf16.msra.mxu0 0
        %1474 = vmatprep.subr.bf16.mxu0 0
        %1475 = vmatpush2.bf16.msra.mxu0 0
        %1476 = vmatprep.subr.bf16.mxu0 0
        %1477 = vmatpush2.bf16.msra.mxu0 0
        %1478 = vmatprep.subr.bf16.mxu0 0
        %1479 = vmatpush2.bf16.msra.mxu0 0
        %1480 = vmatprep.subr.bf16.mxu0 0
        %1481 = vmatpush2.bf16.msra.mxu0 0
        %1482 = vmatprep.subr.bf16.mxu0 0
        %1483 = vmatpush2.bf16.msra.mxu0 0
        %1484 = vmatprep.subr.bf16.mxu0 0
        %1485 = vmatpush2.bf16.msra.mxu0 0
        %1486 = vmatprep.mubr.bf16.mxu0 0
        %1487 = vmatmul.mubr.bf16.gmra.mxu0 %v1452
        %v1488 = vpop.f32.mrf.mxu0
        %v1489 = vadd.f32 0.0, %v1488
        %v1490 = vpop.f32.mrf.mxu0
        %v1491 = vpop.f32.mrf.mxu0
        %v1492 = vpop.f32.mrf.mxu0
        %1493 = vdwg.mxu0
        %v1495 = vrot.slane %v1489, 4
        %1496 = vrot.lane.b32.xlu0 %v1495, 64
        %v1497 = vpop.permute.xlu0 %1496
        %v1499 = vadd.f32 %v506, %v1497
        %v1500 = vxor.u32 %v1499, 2147483648
        %v1501 = vmul.f32 %v1500, 1.442695
        %v1502 = vpow.pop %v1501
        %v1503 = vadd.f32 %v1502, 1.0
        %v1504 = vrcp.pop %v1503
        %v1505 = vmul.f32 1.0, %v1504
        %v1506 = vtanh.pop %v1499
        %v1508 = vrot.slane %v1433, 1
        %v1510 = vmul.f32 %v1505, %v1508
        %1512 = vrot.lane.b32.xlu0 %v1506, 80
        %v1513 = vpop.permute.xlu0 %1512
        %v1515 = vmul.f32 %v1505, %v1513
        %1517 = vrot.lane.b32.xlu0 %v1515, 16
        %v1518 = vpop.permute.xlu0 %1517
        %v1520 = vadd.f32 %v1510, %v1518
        %v1521 = vtanh.pop %v1520
        %1523 = vrot.lane.b32.xlu0 %v1521, 16
        %v1524 = vpop.permute.xlu0 %1523
        %v1526 = vmul.f32 %v1505, %v1524
        %v1528 = vrot.slane %v1526, 5
        %v1530 = vadd.f32 %v1443, %v1528
        %v1531 = vpack.c.bf16 %v1526, %v1526
        %v1533 = vrot.slane %v1531, 2
        %1534 = vrot.lane.b32.xlu0 %v1533, 32
        %v1535 = vpop.permute.xlu0 %1534
        %v1537 = vsel %vm525, %v1535, 0
        %1539 = vmatprep.subr.bf16.mxu0 0
        %1540 = vmatpush1.bf16.msra.mxu0 0
        %1541 = vmatprep.subr.bf16.mxu0 0
        %1542 = vmatpush1.bf16.msra.mxu0 0
        %1543 = vmatprep.subr.bf16.mxu0 0
        %1544 = vmatpush1.bf16.msra.mxu0 0
        %1545 = vmatprep.subr.bf16.mxu0 0
        %1546 = vmatpush1.bf16.msra.mxu0 0
        %1547 = vmatprep.subr.bf16.mxu0 0
        %1548 = vmatpush1.bf16.msra.mxu0 0
        %1549 = vmatprep.subr.bf16.mxu0 0
        %1550 = vmatpush1.bf16.msra.mxu0 0
        %1551 = vmatprep.subr.bf16.mxu0 0
        %1552 = vmatpush1.bf16.msra.mxu0 0
        %1553 = vmatprep.subr.bf16.mxu0 0
        %1554 = vmatpush1.bf16.msra.mxu0 %v1191
        %1555 = vmatprep.subr.bf16.mxu0 0
        %1556 = vmatpush2.bf16.msra.mxu0 0
        %1557 = vmatprep.subr.bf16.mxu0 0
        %1558 = vmatpush2.bf16.msra.mxu0 0
        %1559 = vmatprep.subr.bf16.mxu0 0
        %1560 = vmatpush2.bf16.msra.mxu0 0
        %1561 = vmatprep.subr.bf16.mxu0 0
        %1562 = vmatpush2.bf16.msra.mxu0 0
        %1563 = vmatprep.subr.bf16.mxu0 0
        %1564 = vmatpush2.bf16.msra.mxu0 0
        %1565 = vmatprep.subr.bf16.mxu0 0
        %1566 = vmatpush2.bf16.msra.mxu0 0
        %1567 = vmatprep.subr.bf16.mxu0 0
        %1568 = vmatpush2.bf16.msra.mxu0 0
        %1569 = vmatprep.subr.bf16.mxu0 0
        %1570 = vmatpush2.bf16.msra.mxu0 0
        %1571 = vmatprep.mubr.bf16.mxu0 0
        %1572 = vmatmul.mubr.bf16.gmra.mxu0 %v1537
        %v1573 = vpop.f32.mrf.mxu0
        %v1574 = vadd.f32 0.0, %v1573
        %v1575 = vpop.f32.mrf.mxu0
        %v1576 = vpop.f32.mrf.mxu0
        %v1577 = vpop.f32.mrf.mxu0
        %1578 = vdwg.mxu0
        %v1580 = vrot.slane %v1574, 5
        %1581 = vrot.lane.b32.xlu0 %v1580, 64
        %v1582 = vpop.permute.xlu0 %1581
        %v1584 = vadd.f32 %v506, %v1582
        %v1585 = vxor.u32 %v1584, 2147483648
        %v1586 = vmul.f32 %v1585, 1.442695
        %v1587 = vpow.pop %v1586
        %v1588 = vadd.f32 %v1587, 1.0
        %v1589 = vrcp.pop %v1588
        %v1590 = vmul.f32 1.0, %v1589
        %v1591 = vtanh.pop %v1584
        %v1593 = vrot.slane %v1520, 1
        %v1595 = vmul.f32 %v1590, %v1593
        %1597 = vrot.lane.b32.xlu0 %v1591, 80
        %v1598 = vpop.permute.xlu0 %1597
        %v1600 = vmul.f32 %v1590, %v1598
        %1602 = vrot.lane.b32.xlu0 %v1600, 16
        %v1603 = vpop.permute.xlu0 %1602
        %v1605 = vadd.f32 %v1595, %v1603
        %v1606 = vtanh.pop %v1605
        %1608 = vrot.lane.b32.xlu0 %v1606, 16
        %v1609 = vpop.permute.xlu0 %1608
        %v1611 = vmul.f32 %v1590, %v1609
        %v1613 = vrot.slane %v1611, 4
        %v1615 = vadd.f32 %v1530, %v1613
        %v1616 = vpack.c.bf16 %v1611, %v1611
        %v1618 = vshrl.u32 %v1616, 16
        %v1620 = vrot.slane %v1618, 1
        %1621 = vrot.lane.b32.xlu0 %v1620, 32
        %v1622 = vpop.permute.xlu0 %1621
        %v1624 = vsel %vm525, %v1622, 0
        %1626 = vmatprep.subr.bf16.mxu0 0
        %1627 = vmatpush1.bf16.msra.mxu0 0
        %1628 = vmatprep.subr.bf16.mxu0 0
        %1629 = vmatpush1.bf16.msra.mxu0 0
        %1630 = vmatprep.subr.bf16.mxu0 0
        %1631 = vmatpush1.bf16.msra.mxu0 0
        %1632 = vmatprep.subr.bf16.mxu0 0
        %1633 = vmatpush1.bf16.msra.mxu0 0
        %1634 = vmatprep.subr.bf16.mxu0 0
        %1635 = vmatpush1.bf16.msra.mxu0 0
        %1636 = vmatprep.subr.bf16.mxu0 0
        %1637 = vmatpush1.bf16.msra.mxu0 0
        %1638 = vmatprep.subr.bf16.mxu0 0
        %1639 = vmatpush1.bf16.msra.mxu0 0
        %1640 = vmatprep.subr.bf16.mxu0 0
        %1641 = vmatpush1.bf16.msra.mxu0 %v1191
        %1642 = vmatprep.subr.bf16.mxu0 0
        %1643 = vmatpush2.bf16.msra.mxu0 0
        %1644 = vmatprep.subr.bf16.mxu0 0
        %1645 = vmatpush2.bf16.msra.mxu0 0
        %1646 = vmatprep.subr.bf16.mxu0 0
        %1647 = vmatpush2.bf16.msra.mxu0 0
        %1648 = vmatprep.subr.bf16.mxu0 0
        %1649 = vmatpush2.bf16.msra.mxu0 0
        %1650 = vmatprep.subr.bf16.mxu0 0
        %1651 = vmatpush2.bf16.msra.mxu0 0
        %1652 = vmatprep.subr.bf16.mxu0 0
        %1653 = vmatpush2.bf16.msra.mxu0 0
        %1654 = vmatprep.subr.bf16.mxu0 0
        %1655 = vmatpush2.bf16.msra.mxu0 0
        %1656 = vmatprep.subr.bf16.mxu0 0
        %1657 = vmatpush2.bf16.msra.mxu0 0
        %1658 = vmatprep.mubr.bf16.mxu0 0
        %1659 = vmatmul.mubr.bf16.gmra.mxu0 %v1624
        %v1660 = vpop.f32.mrf.mxu0
        %v1661 = vadd.f32 0.0, %v1660
        %v1662 = vpop.f32.mrf.mxu0
        %v1663 = vpop.f32.mrf.mxu0
        %v1664 = vpop.f32.mrf.mxu0
        %1665 = vdwg.mxu0
        %v1667 = vrot.slane %v1661, 6
        %1668 = vrot.lane.b32.xlu0 %v1667, 64
        %v1669 = vpop.permute.xlu0 %1668
        %v1671 = vadd.f32 %v506, %v1669
        %v1672 = vxor.u32 %v1671, 2147483648
        %v1673 = vmul.f32 %v1672, 1.442695
        %v1674 = vpow.pop %v1673
        %v1675 = vadd.f32 %v1674, 1.0
        %v1676 = vrcp.pop %v1675
        %v1677 = vmul.f32 1.0, %v1676
        %v1678 = vtanh.pop %v1671
        %v1680 = vrot.slane %v1605, 1
        %v1682 = vmul.f32 %v1677, %v1680
        %1684 = vrot.lane.b32.xlu0 %v1678, 80
        %v1685 = vpop.permute.xlu0 %1684
        %v1687 = vmul.f32 %v1677, %v1685
        %1689 = vrot.lane.b32.xlu0 %v1687, 16
        %v1690 = vpop.permute.xlu0 %1689
        %v1692 = vadd.f32 %v1682, %v1690
        %v1693 = vtanh.pop %v1692
        %1695 = vrot.lane.b32.xlu0 %v1693, 16
        %v1696 = vpop.permute.xlu0 %1695
        %v1698 = vmul.f32 %v1677, %v1696
        %v1700 = vrot.slane %v1698, 3
        %v1702 = vadd.f32 %v1615, %v1700
        %v1703 = vpack.c.bf16 %v1698, %v1698
        %v1705 = vrot.slane %v1703, 1
        %1706 = vrot.lane.b32.xlu0 %v1705, 32
        %v1707 = vpop.permute.xlu0 %1706
        %v1709 = vsel %vm525, %v1707, 0
        %1711 = vmatprep.subr.bf16.mxu0 0
        %1712 = vmatpush1.bf16.msra.mxu0 0
        %1713 = vmatprep.subr.bf16.mxu0 0
        %1714 = vmatpush1.bf16.msra.mxu0 0
        %1715 = vmatprep.subr.bf16.mxu0 0
        %1716 = vmatpush1.bf16.msra.mxu0 0
        %1717 = vmatprep.subr.bf16.mxu0 0
        %1718 = vmatpush1.bf16.msra.mxu0 0
        %1719 = vmatprep.subr.bf16.mxu0 0
        %1720 = vmatpush1.bf16.msra.mxu0 0
        %1721 = vmatprep.subr.bf16.mxu0 0
        %1722 = vmatpush1.bf16.msra.mxu0 0
        %1723 = vmatprep.subr.bf16.mxu0 0
        %1724 = vmatpush1.bf16.msra.mxu0 0
        %1725 = vmatprep.subr.bf16.mxu0 0
        %1726 = vmatpush1.bf16.msra.mxu0 %v1191
        %1727 = vmatprep.subr.bf16.mxu0 0
        %1728 = vmatpush2.bf16.msra.mxu0 0
        %1729 = vmatprep.subr.bf16.mxu0 0
        %1730 = vmatpush2.bf16.msra.mxu0 0
        %1731 = vmatprep.subr.bf16.mxu0 0
        %1732 = vmatpush2.bf16.msra.mxu0 0
        %1733 = vmatprep.subr.bf16.mxu0 0
        %1734 = vmatpush2.bf16.msra.mxu0 0
        %1735 = vmatprep.subr.bf16.mxu0 0
        %1736 = vmatpush2.bf16.msra.mxu0 0
        %1737 = vmatprep.subr.bf16.mxu0 0
        %1738 = vmatpush2.bf16.msra.mxu0 0
        %1739 = vmatprep.subr.bf16.mxu0 0
        %1740 = vmatpush2.bf16.msra.mxu0 0
        %1741 = vmatprep.subr.bf16.mxu0 0
        %1742 = vmatpush2.bf16.msra.mxu0 0
        %1743 = vmatprep.mubr.bf16.mxu0 0
        %1744 = vmatmul.mubr.bf16.gmra.mxu0 %v1709
        %v1745 = vpop.f32.mrf.mxu0
        %v1746 = vadd.f32 0.0, %v1745
        %v1747 = vpop.f32.mrf.mxu0
        %v1748 = vpop.f32.mrf.mxu0
        %v1749 = vpop.f32.mrf.mxu0
        %1750 = vdwg.mxu0
        %v1752 = vrot.slane %v1746, 7
        %1753 = vrot.lane.b32.xlu0 %v1752, 64
        %v1754 = vpop.permute.xlu0 %1753
        %v1756 = vadd.f32 %v506, %v1754
        %v1757 = vxor.u32 %v1756, 2147483648
        %v1758 = vmul.f32 %v1757, 1.442695
        %v1759 = vpow.pop %v1758
        %v1760 = vadd.f32 %v1759, 1.0
        %v1761 = vrcp.pop %v1760
        %v1762 = vmul.f32 1.0, %v1761
        %v1763 = vtanh.pop %v1756
        %v1765 = vrot.slane %v1692, 1
        %v1767 = vmul.f32 %v1762, %v1765
        %1769 = vrot.lane.b32.xlu0 %v1763, 80
        %v1770 = vpop.permute.xlu0 %1769
        %v1772 = vmul.f32 %v1762, %v1770
        %1774 = vrot.lane.b32.xlu0 %v1772, 16
        %v1775 = vpop.permute.xlu0 %1774
        %v1777 = vadd.f32 %v1767, %v1775
        %v1778 = vtanh.pop %v1777
        %1780 = vrot.lane.b32.xlu0 %v1778, 16
        %v1781 = vpop.permute.xlu0 %1780
        %v1783 = vmul.f32 %v1762, %v1781
        %v1785 = vrot.slane %v1783, 2
        %v1787 = vadd.f32 %v1702, %v1785
        %v1788 = vpack.c.bf16 %v1783, %v1783
        %v1790 = vshrl.u32 %v1788, 16
        %1792 = vrot.lane.b32.xlu0 %v1790, 32
        %v1793 = vpop.permute.xlu0 %1792
        %v1795 = vsel %vm525, %v1793, 0
        %1797 = vmatprep.subr.bf16.mxu0 0
        %1798 = vmatpush1.bf16.msra.mxu0 0
        %1799 = vmatprep.subr.bf16.mxu0 0
        %1800 = vmatpush1.bf16.msra.mxu0 0
        %1801 = vmatprep.subr.bf16.mxu0 0
        %1802 = vmatpush1.bf16.msra.mxu0 0
        %1803 = vmatprep.subr.bf16.mxu0 0
        %1804 = vmatpush1.bf16.msra.mxu0 0
        %1805 = vmatprep.subr.bf16.mxu0 0
        %1806 = vmatpush1.bf16.msra.mxu0 0
        %1807 = vmatprep.subr.bf16.mxu0 0
        %1808 = vmatpush1.bf16.msra.mxu0 0
        %1809 = vmatprep.subr.bf16.mxu0 0
        %1810 = vmatpush1.bf16.msra.mxu0 0
        %1811 = vmatprep.subr.bf16.mxu0 0
        %1812 = vmatpush1.bf16.msra.mxu0 %v1191
        %1813 = vmatprep.subr.bf16.mxu0 0
        %1814 = vmatpush2.bf16.msra.mxu0 0
        %1815 = vmatprep.subr.bf16.mxu0 0
        %1816 = vmatpush2.bf16.msra.mxu0 0
        %1817 = vmatprep.subr.bf16.mxu0 0
        %1818 = vmatpush2.bf16.msra.mxu0 0
        %1819 = vmatprep.subr.bf16.mxu0 0
        %1820 = vmatpush2.bf16.msra.mxu0 0
        %1821 = vmatprep.subr.bf16.mxu0 0
        %1822 = vmatpush2.bf16.msra.mxu0 0
        %1823 = vmatprep.subr.bf16.mxu0 0
        %1824 = vmatpush2.bf16.msra.mxu0 0
        %1825 = vmatprep.subr.bf16.mxu0 0
        %1826 = vmatpush2.bf16.msra.mxu0 0
        %1827 = vmatprep.subr.bf16.mxu0 0
        %1828 = vmatpush2.bf16.msra.mxu0 0
        %1829 = vmatprep.mubr.bf16.mxu0 0
        %1830 = vmatmul.mubr.bf16.gmra.mxu0 %v1795
        %v1831 = vpop.f32.mrf.mxu0
        %v1832 = vadd.f32 0.0, %v1831
        %v1833 = vpop.f32.mrf.mxu0
        %v1834 = vpop.f32.mrf.mxu0
        %v1835 = vpop.f32.mrf.mxu0
        %1836 = vdwg.mxu0
        %1838 = vrot.lane.b32.xlu0 %v1832, 64
        %v1839 = vpop.permute.xlu0 %1838
        %v1841 = vadd.f32 %v506, %v1839
        %v1842 = vxor.u32 %v1841, 2147483648
        %v1843 = vmul.f32 %v1842, 1.442695
        %v1844 = vpow.pop %v1843
        %v1845 = vadd.f32 %v1844, 1.0
        %v1846 = vrcp.pop %v1845
        %v1847 = vmul.f32 1.0, %v1846
        %v1848 = vtanh.pop %v1841
        %v1850 = vrot.slane %v1777, 1
        %v1852 = vmul.f32 %v1847, %v1850
        %1854 = vrot.lane.b32.xlu0 %v1848, 80
        %v1855 = vpop.permute.xlu0 %1854
        %v1857 = vmul.f32 %v1847, %v1855
        %1859 = vrot.lane.b32.xlu0 %v1857, 16
        %v1860 = vpop.permute.xlu0 %1859
        %v1862 = vadd.f32 %v1852, %v1860
        %v1863 = vtanh.pop %v1862
        %1865 = vrot.lane.b32.xlu0 %v1863, 16
        %v1866 = vpop.permute.xlu0 %1865
        %v1868 = vmul.f32 %v1847, %v1866
        %v1870 = vrot.slane %v1868, 1
        %v1872 = vadd.f32 %v1787, %v1870
        %1874 = vrot.lane.b32.xlu0 %v1183, 96
        %v1875 = vpop.permute.xlu0 %1874
        %v1878 = vrot.slane %v1872, 7
        %1879 = vrot.lane.b32.xlu0 %v1878, 48
        %v1880 = vpop.permute.xlu0 %1879
        %v1882 = vsel %vm525, %v1875, %v1880
        %v1883 = vpack.c.bf16 %v1882, %v1882
        %v1884 = vld [vmem:[#allocation10] sm:$0xf]
        %v1885 = vld [vmem:[#allocation10 + $0x4] sm:$0xf]
        %v1886 = vld [vmem:[#allocation10 + $0x8] sm:$0xf]
        %v1887 = vld [vmem:[#allocation10 + $0xc] sm:$0xf]
        %v1888 = vld [vmem:[%s6] sm:$0x1]
        %v1893 = vunpack.c.l.b16 %v1884
        %v1894 = vunpack.c.l.b16 %v1885
        %v1895 = vunpack.c.l.b16 %v1886
        %v1896 = vunpack.c.l.b16 %v1887
        %v1897 = vpack.c.b16 %v1894, %v1893
        %v1898 = vpack.c.b16 %v1896, %v1895
        %v1902 = vsel %vm467, %v1883, 0
        %1904 = vmatprep.subr.bf16.mxu0 0
        %1905 = vmatpush1.bf16.msra.mxu0 0
        %1906 = vmatprep.subr.bf16.mxu0 0
        %1907 = vmatpush1.bf16.msra.mxu0 0
        %1908 = vmatprep.subr.bf16.mxu0 0
        %1909 = vmatpush1.bf16.msra.mxu0 0
        %1910 = vmatprep.subr.bf16.mxu0 0
        %1911 = vmatpush1.bf16.msra.mxu0 0
        %1912 = vmatprep.subr.bf16.mxu0 0
        %1913 = vmatpush1.bf16.msra.mxu0 0
        %1914 = vmatprep.subr.bf16.mxu0 0
        %1915 = vmatpush1.bf16.msra.mxu0 0
        %1916 = vmatprep.subr.bf16.mxu0 0
        %1917 = vmatpush1.bf16.msra.mxu0 %v1898
        %1918 = vmatprep.subr.bf16.mxu0 0
        %1919 = vmatpush1.bf16.msra.mxu0 %v1897
        %1920 = vmatprep.subr.bf16.mxu0 0
        %1921 = vmatpush2.bf16.msra.mxu0 0
        %1922 = vmatprep.subr.bf16.mxu0 0
        %1923 = vmatpush2.bf16.msra.mxu0 0
        %1924 = vmatprep.subr.bf16.mxu0 0
        %1925 = vmatpush2.bf16.msra.mxu0 0
        %1926 = vmatprep.subr.bf16.mxu0 0
        %1927 = vmatpush2.bf16.msra.mxu0 0
        %1928 = vmatprep.subr.bf16.mxu0 0
        %1929 = vmatpush2.bf16.msra.mxu0 0
        %1930 = vmatprep.subr.bf16.mxu0 0
        %1931 = vmatpush2.bf16.msra.mxu0 0
        %1932 = vmatprep.subr.bf16.mxu0 0
        %1933 = vmatpush2.bf16.msra.mxu0 0
        %1934 = vmatprep.subr.bf16.mxu0 0
        %1935 = vmatpush2.bf16.msra.mxu0 0
        %1936 = vmatprep.mubr.bf16.mxu0 0
        %1937 = vmatmul.mubr.bf16.gmra.mxu0 %v1902
        %v1938 = vpop.f32.mrf.mxu0
        %v1939 = vadd.f32 %v1888, %v1938
        %v1940 = vpop.f32.mrf.mxu0
        %v1941 = vpop.f32.mrf.mxu0
        %v1942 = vpop.f32.mrf.mxu0
        %1943 = vdwg.mxu0
        %v1944 = vmax.f32 %v1939, 0.0
        %v1945 = vpack.c.bf16 %v1944, %v1944
        %v1946 = vld [vmem:[#allocation11] sm:$0xf]
        %v1947 = vld [vmem:[#allocation11 + $0x4] sm:$0xf]
        %v1948 = vld [vmem:[#allocation11 + $0x8] sm:$0xf]
        %v1949 = vld [vmem:[#allocation11 + $0xc] sm:$0xf]
        %v1950 = vld [vmem:[#allocation11 + $0x10] sm:$0xf]
        %v1951 = vld [vmem:[#allocation11 + $0x14] sm:$0xf]
        %v1952 = vld [vmem:[#allocation11 + $0x18] sm:$0xf]
        %v1953 = vld [vmem:[#allocation11 + $0x1c] sm:$0xf]
        %v1954 = vld [vmem:[#allocation11 + $0x20] sm:$0xf]
        %v1955 = vld [vmem:[#allocation11 + $0x24] sm:$0xf]
        %v1956 = vld [vmem:[#allocation11 + $0x28] sm:$0xf]
        %v1957 = vld [vmem:[#allocation11 + $0x2c] sm:$0xf]
        %v1958 = vld [vmem:[#allocation11 + $0x30] sm:$0xf]
        %v1959 = vld [vmem:[#allocation11 + $0x34] sm:$0xf]
        %v1960 = vld [vmem:[#allocation11 + $0x38] sm:$0xf]
        %v1961 = vld [vmem:[#allocation11 + $0x3c] sm:$0xf]
        %v1962 = vld [vmem:[%s8] sm:$0x1]
        %v1979 = vunpack.c.l.b16 %v1946
        %v1980 = vunpack.c.l.b16 %v1947
        %v1981 = vunpack.c.l.b16 %v1948
        %v1982 = vunpack.c.l.b16 %v1949
        %v1983 = vunpack.c.l.b16 %v1950
        %v1984 = vunpack.c.l.b16 %v1951
        %v1985 = vunpack.c.l.b16 %v1952
        %v1986 = vunpack.c.l.b16 %v1953
        %v1987 = vunpack.c.l.b16 %v1954
        %v1988 = vunpack.c.l.b16 %v1955
        %v1989 = vunpack.c.l.b16 %v1956
        %v1990 = vunpack.c.l.b16 %v1957
        %v1991 = vunpack.c.l.b16 %v1958
        %v1992 = vunpack.c.l.b16 %v1959
        %v1993 = vunpack.c.l.b16 %v1960
        %v1994 = vunpack.c.l.b16 %v1961
        %v1995 = vpack.c.b16 %v1980, %v1979
        %v1996 = vpack.c.b16 %v1982, %v1981
        %v1997 = vpack.c.b16 %v1984, %v1983
        %v1998 = vpack.c.b16 %v1986, %v1985
        %v1999 = vpack.c.b16 %v1988, %v1987
        %v2000 = vpack.c.b16 %v1990, %v1989
        %v2001 = vpack.c.b16 %v1992, %v1991
        %v2002 = vpack.c.b16 %v1994, %v1993
        %2011 = vmatprep.subr.bf16.mxu0 0
        %2012 = vmatpush1.bf16.msra.mxu0 %v2002
        %2013 = vmatprep.subr.bf16.mxu0 0
        %2014 = vmatpush1.bf16.msra.mxu0 %v2001
        %2015 = vmatprep.subr.bf16.mxu0 0
        %2016 = vmatpush1.bf16.msra.mxu0 %v2000
        %2017 = vmatprep.subr.bf16.mxu0 0
        %2018 = vmatpush1.bf16.msra.mxu0 %v1999
        %2019 = vmatprep.subr.bf16.mxu0 0
        %2020 = vmatpush1.bf16.msra.mxu0 %v1998
        %2021 = vmatprep.subr.bf16.mxu0 0
        %2022 = vmatpush1.bf16.msra.mxu0 %v1997
        %2023 = vmatprep.subr.bf16.mxu0 0
        %2024 = vmatpush1.bf16.msra.mxu0 %v1996
        %2025 = vmatprep.subr.bf16.mxu0 0
        %2026 = vmatpush1.bf16.msra.mxu0 %v1995
        %2027 = vmatprep.subr.bf16.mxu0 0
        %2028 = vmatpush2.bf16.msra.mxu0 0
        %2029 = vmatprep.subr.bf16.mxu0 0
        %2030 = vmatpush2.bf16.msra.mxu0 0
        %2031 = vmatprep.subr.bf16.mxu0 0
        %2032 = vmatpush2.bf16.msra.mxu0 0
        %2033 = vmatprep.subr.bf16.mxu0 0
        %2034 = vmatpush2.bf16.msra.mxu0 0
        %2035 = vmatprep.subr.bf16.mxu0 0
        %2036 = vmatpush2.bf16.msra.mxu0 0
        %2037 = vmatprep.subr.bf16.mxu0 0
        %2038 = vmatpush2.bf16.msra.mxu0 0
        %2039 = vmatprep.subr.bf16.mxu0 0
        %2040 = vmatpush2.bf16.msra.mxu0 0
        %2041 = vmatprep.subr.bf16.mxu0 0
        %2042 = vmatpush2.bf16.msra.mxu0 0
        %2043 = vmatprep.mubr.bf16.mxu0 0
        %2044 = vmatmul.mubr.bf16.gmra.mxu0 %v1945
        %v2045 = vpop.f32.mrf.mxu0
        %v2046 = vadd.f32 %v1962, %v2045
        %v2047 = vpop.f32.mrf.mxu0
        %v2048 = vpop.f32.mrf.mxu0
        %v2049 = vpop.f32.mrf.mxu0
        %2050 = vdwg.mxu0
        %vm2051 = vcmask 1040384
        %v2052 = vsel %vm2051, %v2046, -inf
        %2053 = vmax.xlane.f32.xlu0 %v2052
        %v2054 = vpop.xlane.xlu0 %2053
        %v2055 = vsub.f32 %v2046, %v2054
        %v2056 = vmul.f32 %v2055, 1.442695
        %v2057 = vpow.pop %v2056
        %v2058 = vsel %vm2051, %v2057, 0.0
        %2059 = vadd.xlane.f32.xlu0 %v2058
        %v2060 = vpop.xlane.xlu0 %2059
        %v2061 = vrcp.pop %v2060
        %v2062 = vmul.f32 %v2057, %v2061
        %2063 = vst [vmem:[%s441] sm:$0x1] %v2062
        %s2064 = sand.u32 %s238, 1
        %s2065 = scalar_lea.sflag [#allocation4], %s2064
        %s2066 = sand.u32 %s238, 1
        %s2067 = scalar_lea.vmem [#allocation13], %s2066
        // Predicated region
        $region81: #{tpu_custom_call.1} parent=55 // pred_check
          %p2068 = pneg %p248
        $region82: #{tpu_custom_call.1} parent=55 // pred_check_branch
          %2070 = sbr.rel (%p2068) target = $region84
        $region83: #{tpu_custom_call.1} parent=55 // pred_region
          %s2072 = ssub.s32 16, 16
          %2073 = vsyncadd %s2065, %s2072
          %s2074 = smul.addr %s31, 16
          %s2075 = scalar_lea.hbm %s9, %s2074
          %s2077 = sshll.u32 %s2067, 4
          %s2078 = int_to_ptr.vmem [resolvable:$true] %s2077
          %2080 = dma.vmem_to_hbm [thread:$0]  %s2078, 16, %s2075, %s2065
        $region84: #{tpu_custom_call.1} parent=55 // pred_fallthru
          _
      $region56: #{tpu_custom_call.1} parent=5 // pred_fallthru
        _
      %p2081 = scmp.le.s32.totalorder 2, %s26
      // Predicated region
      $region85: #{tpu_custom_call.1} parent=5 // pred_check
        %p2082 = pneg %p2081
      $region86: #{tpu_custom_call.1} parent=5 // pred_check_branch
        %2084 = sbr.rel (%p2082) target = $region88
      $region87: #{tpu_custom_call.1} parent=5 // pred_region
        %s2085 = ssub.s32 %s26, 2
        // Predicated region
        $region89: #{tpu_custom_call.1} parent=87 // pred_check
          %p2086 = pneg %p254
        $region90: #{tpu_custom_call.1} parent=87 // pred_check_branch
          %2088 = sbr.rel (%p2086) target = $region92
        $region91: #{tpu_custom_call.1} parent=87 // pred_region
          %s2089 = sand.u32 %s239, 1
          %s2090 = scalar_lea.sflag [#allocation4], %s2089
          %s2091 = sand.u32 %s239, 1
          %s2092 = scalar_lea.vmem [#allocation13], %s2091
          %2093 = dma.done %s2090, 16
        $region92: #{tpu_custom_call.1} parent=87 // pred_fallthru
          _
      $region88: #{tpu_custom_call.1} parent=5 // pred_fallthru
        _
    $region6: #{tpu_custom_call.1} parent=1 // loop_footer
      %s30 = sadd.s32 1, %s26
    $region7: #{tpu_custom_call.1} parent=1 // loop_footer_branch
      %25 = sbr.rel target = $region3
    $region8: #{tpu_custom_call.1} parent=1 // loop_exit
      _
    %2094 = vsyncpa [#allocation3], 1
    %s2095 = scalar_lea.sflag [#allocation3], 1
    %2096 = vsyncpa %s2095, 1
    %2097 = vsyncpa [#allocation6], 1
    %s2098 = scalar_lea.sflag [#allocation6], 1
    %2099 = vsyncpa %s2098, 1
    %2100 = vsyncpa [#allocation9], 1
    %2101 = vsyncpa [#allocation12], 1
    %2102 = vsyncpa [#allocation4], 1
    %s2103 = scalar_lea.sflag [#allocation4], 1
    %2104 = vsyncpa %s2103, 1

</llo_original>
